<compile_context>
chip_gen: v5e
topology: v5e:2x2
jax: 0.10.0
libtpu: 0.0.40
codegen_flags: <defaults>
</compile_context>

<pallas_src>
import functools

import jax
import jax.numpy as jnp
from jax.experimental import pallas as pl
from jax.experimental.pallas import tpu as pltpu

# AnomalyDetector dims (input_dim=5, hidden_dim=64):
#   encoder: 5 -> 64 -> ReLU -> 32 -> ReLU -> 16
#   decoder: 16 -> 32 -> ReLU -> 64 -> ReLU -> 5
INPUT_DIM = 5
HIDDEN_DIM = 64

_PARAM_NAMES = ("w1", "b1", "w2", "b2", "w3", "b3",
                "w4", "b4", "w5", "b5", "w6", "b6")


def _cdiv(a: int, b: int) -> int:
    return -(-a // b)


def _round_up(x: int, m: int) -> int:
    return ((x + m - 1) // m) * m


def _pick_tile_b(batch: int, requested: int) -> int:
    """Batch-tile size: big tiles (amortize per-step overhead, keep each layer
    streaming on the MXU) but >=2 grid steps on large batches so v7x's two
    TensorCores can split the 'parallel' axis."""
    requested = max(256, (int(requested) // 256) * 256)   # multiple of 256
    if batch <= requested:
        if batch >= 1024:
            return _round_up(_cdiv(batch, 2), 256)         # 2 grid steps
        return batch                                       # single full block
    return min(requested, _round_up(_cdiv(batch, 2), 256))


def _autoencoder_kernel(x_ref,
                        w1_ref, b1_ref, w2_ref, b2_ref, w3_ref, b3_ref,
                        w4_ref, b4_ref, w5_ref, b5_ref, w6_ref, b6_ref,
                        out_ref, *, bf16_matmul: bool):
    """Full encoder+decoder MLP for one batch tile.

    Input arrives batch-major (TILE_B, in_dim); the first matmul uses the
    transposed-RHS pattern (W @ x.T) so everything downstream is feature-major
    (features on sublanes, batch on the 128-wide lane axis): every matmul is
    W(out,in) @ h(in,TILE_B) on the MXU with f32 accumulation, and every
    bias-add / ReLU / store is lane-dense.
    """
    enc_dim = w3_ref.shape[0]

    if bf16_matmul:
        # bf16 operands (single MXU pass), f32 accumulate; ReLU/bias stay f32.
        def dot(w_ref, h):
            return jnp.dot(w_ref[...].astype(jnp.bfloat16),
                           h.astype(jnp.bfloat16),
                           preferred_element_type=jnp.float32)
    else:
        # Exact f32 (matches the PyTorch module).
        def dot(w_ref, h):
            return jnp.dot(w_ref[...], h,
                           preferred_element_type=jnp.float32,
                           precision=jax.lax.Precision.HIGHEST)

    x_t = x_ref[...].T                                        # (in_dim, TILE_B)

    # ---- encoder ----
    h = jnp.maximum(dot(w1_ref, x_t) + b1_ref[...], 0.0)      # (64, TILE_B)
    h = jnp.maximum(dot(w2_ref, h) + b2_ref[...], 0.0)        # (32, TILE_B)
    enc = dot(w3_ref, h) + b3_ref[...]                        # (16, TILE_B)

    # ---- decoder ----
    h = jnp.maximum(dot(w4_ref, enc) + b4_ref[...], 0.0)      # (32, TILE_B)
    h = jnp.maximum(dot(w5_ref, h) + b5_ref[...], 0.0)        # (64, TILE_B)
    dec = dot(w6_ref, h) + b6_ref[...]                        # (5, TILE_B)

    # Single merged, lane-dense writeback at the end of the kernel
    # (one output DMA per grid step instead of two).
    out_ref[0:enc_dim, :] = enc.astype(out_ref.dtype)
    out_ref[enc_dim:, :] = dec.astype(out_ref.dtype)


@functools.partial(jax.jit, static_argnames=("tile_b", "bf16_matmul"))
def anomaly_detector_forward(x, params, tile_b: int = 2048,
                             bf16_matmul: bool = False):
    """x: (B, input_dim) float32.  params: PyTorch-layout weights/biases
    (weight (out,in); bias (out,) or (out,1)).

    Returns (encoded (B, hidden//4), decoded (B, input_dim)), matching
    AnomalyDetector.forward.
    """
    B, in_dim = x.shape
    enc_dim = params["w3"].shape[0]
    dec_dim = params["w6"].shape[0]
    out_dim = enc_dim + dec_dim
    dt = jnp.float32

    tb = _pick_tile_b(B, tile_b)
    grid = (_cdiv(B, tb),)

    # Native PyTorch Linear layout; biases accepted as (out,) or (out, 1).
    weight_args = []
    for name in _PARAM_NAMES:
        p = params[name].astype(dt)
        if name.startswith("b"):
            p = p.reshape(-1, 1)
        weight_args.append(p)

    # Full-array parameter blocks with constant index_maps: DMA'd once,
    # VMEM-resident for every batch tile.
    param_specs = [pl.BlockSpec(p.shape, lambda i: (0, 0)) for p in weight_args]

    flops = 2 * B * sum(int(w.shape[0]) * int(w.shape[1])
                        for w in weight_args[0::2])
    param_bytes = sum(int(p.size) * 4 for p in weight_args)
    cost = pl.CostEstimate(
        flops=flops,
        transcendentals=0,
        bytes_accessed=4 * B * (in_dim + out_dim) + param_bytes)

    kernel = functools.partial(_autoencoder_kernel, bf16_matmul=bf16_matmul)

    out = pl.pallas_call(
        kernel,
        out_shape=jax.ShapeDtypeStruct((out_dim, B), dt),
        grid=grid,
        in_specs=[pl.BlockSpec((tb, in_dim), lambda i: (i, 0))] + param_specs,
        out_specs=pl.BlockSpec((out_dim, tb), lambda i: (0, i)),
        compiler_params=pltpu.CompilerParams(
            # batch tiles are independent -> shard across v7x's 2 TensorCores
            dimension_semantics=("parallel",)),
        cost_estimate=cost,
    )(x.astype(dt), *weight_args)

    # Back to the PyTorch (batch, features) convention (tiny slabs).
    return out[:enc_dim, :].T, out[enc_dim:, :].T


def init_params(key, input_dim=INPUT_DIM, hidden_dim=HIDDEN_DIM):
    """Deterministic synthetic parameters in native PyTorch Linear layout:
    weight (out_features, in_features), bias stored as (out_features, 1)."""
    dims = [
        (input_dim, hidden_dim),             # encoder L1
        (hidden_dim, hidden_dim // 2),       # encoder L2
        (hidden_dim // 2, hidden_dim // 4),  # encoder L3
        (hidden_dim // 4, hidden_dim // 2),  # decoder L1
        (hidden_dim // 2, hidden_dim),       # decoder L2
        (hidden_dim, input_dim),             # decoder L3
    ]
    params = {}
    for idx, (fan_in, fan_out) in enumerate(dims, start=1):
        key, kw, kb = jax.random.split(key, 3)
        bound = 1.0 / jnp.sqrt(float(fan_in))
        params[f"w{idx}"] = jax.random.uniform(
            kw, (fan_out, fan_in), jnp.float32, -bound, bound)
        params[f"b{idx}"] = jax.random.uniform(
            kb, (fan_out, 1), jnp.float32, -bound, bound)
    return params


def _reference_forward(x, params):
    """Pure-JAX reference (batch-major Linear formulation, exact f32)."""
    hp = jax.lax.Precision.HIGHEST

    def lin(h, w, b):
        return jnp.dot(h, w.T, precision=hp) + b.reshape(1, -1)

    h = jnp.maximum(lin(x, params["w1"], params["b1"]), 0.0)
    h = jnp.maximum(lin(h, params["w2"], params["b2"]), 0.0)
    enc = lin(h, params["w3"], params["b3"])
    h = jnp.maximum(lin(enc, params["w4"], params["b4"]), 0.0)
    h = jnp.maximum(lin(h, params["w5"], params["b5"]), 0.0)
    dec = lin(h, params["w6"], params["b6"])
    return enc, dec


if __name__ == "__main__":
    key = jax.random.PRNGKey(0)
    kx, kx2, kp = jax.random.split(key, 3)

    params = init_params(kp)

    # 1) Small demo batch (single grid step).
    B = 8
    x = jax.random.normal(kx, (B, INPUT_DIM), jnp.float32)
    enc, dec = jax.block_until_ready(anomaly_detector_forward(x, params))
    enc_ref, dec_ref = _reference_forward(x, params)
    assert enc.shape == (B, HIDDEN_DIM // 4) and dec.shape == (B, INPUT_DIM)
    assert jnp.allclose(enc, enc_ref, atol=1e-5, rtol=1e-5)
    assert jnp.allclose(dec, dec_ref, atol=1e-5, rtol=1e-5)

    # 2) Multi-tile + ragged-edge path (2 grid steps, last block partial).
    B2 = 384
    x2 = jax.random.normal(kx2, (B2, INPUT_DIM), jnp.float32)
    enc2, dec2 = jax.block_until_ready(
        anomaly_detector_forward(x2, params, tile_b=256))
    enc2_ref, dec2_ref = _reference_forward(x2, params)
    assert jnp.allclose(enc2, enc2_ref, atol=1e-5, rtol=1e-5)
    assert jnp.allclose(dec2, dec2_ref, atol=1e-5, rtol=1e-5)

    # 3) Opt-in bf16-operand MXU fast path (loose tolerance vs exact f32).
    enc3, dec3 = jax.block_until_ready(
        anomaly_detector_forward(x, params, bf16_matmul=True))
    assert jnp.allclose(enc3, enc_ref, atol=1e-1, rtol=1e-1)
    assert jnp.allclose(dec3, dec_ref, atol=1e-1, rtol=1e-1)

    print("KERNEL_OK")
</pallas_src>

<mosaic_0001>
module attributes {stable_mosaic.version = 11 : i64} {
  func.func @_autoencoder_kernel(%arg0: i32, %arg1: memref<8x5xf32, #tpu.memory_space<vmem>>, %arg2: memref<64x5xf32, #tpu.memory_space<vmem>>, %arg3: memref<64x1xf32, #tpu.memory_space<vmem>>, %arg4: memref<32x64xf32, #tpu.memory_space<vmem>>, %arg5: memref<32x1xf32, #tpu.memory_space<vmem>>, %arg6: memref<16x32xf32, #tpu.memory_space<vmem>>, %arg7: memref<16x1xf32, #tpu.memory_space<vmem>>, %arg8: memref<32x16xf32, #tpu.memory_space<vmem>>, %arg9: memref<32x1xf32, #tpu.memory_space<vmem>>, %arg10: memref<64x32xf32, #tpu.memory_space<vmem>>, %arg11: memref<64x1xf32, #tpu.memory_space<vmem>>, %arg12: memref<5x64xf32, #tpu.memory_space<vmem>>, %arg13: memref<5x1xf32, #tpu.memory_space<vmem>>, %arg14: memref<21x8xf32, #tpu.memory_space<vmem>>) attributes {dimension_semantics = [#tpu.dimension_semantics<parallel>], iteration_bounds = array<i64: 1>, scalar_prefetch = 0 : i64, scratch_operands = 0 : i64, tpu.core_type = #tpu.core_type<tc>, window_params = [{transform_indices = @transform_0, window_bounds = array<i64: 8, 5>}, {pipeline_mode = #tpu.pipeline_mode<synchronous>, transform_indices = @transform_1, window_bounds = array<i64: 64, 5>}, {pipeline_mode = #tpu.pipeline_mode<synchronous>, transform_indices = @transform_2, window_bounds = array<i64: 64, 1>}, {pipeline_mode = #tpu.pipeline_mode<synchronous>, transform_indices = @transform_3, window_bounds = array<i64: 32, 64>}, {pipeline_mode = #tpu.pipeline_mode<synchronous>, transform_indices = @transform_4, window_bounds = array<i64: 32, 1>}, {pipeline_mode = #tpu.pipeline_mode<synchronous>, transform_indices = @transform_5, window_bounds = array<i64: 16, 32>}, {pipeline_mode = #tpu.pipeline_mode<synchronous>, transform_indices = @transform_6, window_bounds = array<i64: 16, 1>}, {pipeline_mode = #tpu.pipeline_mode<synchronous>, transform_indices = @transform_7, window_bounds = array<i64: 32, 16>}, {pipeline_mode = #tpu.pipeline_mode<synchronous>, transform_indices = @transform_8, window_bounds = array<i64: 32, 1>}, {pipeline_mode = #tpu.pipeline_mode<synchronous>, transform_indices = @transform_9, window_bounds = array<i64: 64, 32>}, {pipeline_mode = #tpu.pipeline_mode<synchronous>, transform_indices = @transform_10, window_bounds = array<i64: 64, 1>}, {pipeline_mode = #tpu.pipeline_mode<synchronous>, transform_indices = @transform_11, window_bounds = array<i64: 5, 64>}, {pipeline_mode = #tpu.pipeline_mode<synchronous>, transform_indices = @transform_12, window_bounds = array<i64: 5, 1>}, {transform_indices = @transform_13, window_bounds = array<i64: 21, 8>}]} {
    %c0 = arith.constant 0 : index
    %c0_0 = arith.constant 0 : index
    %0 = vector.load %arg1[%c0, %c0_0] : memref<8x5xf32, #tpu.memory_space<vmem>>, vector<8x5xf32>
    %1 = tpu.transpose %0, [1, 0] : vector<8x5xf32> -> vector<5x8xf32>
    %c0_1 = arith.constant 0 : index
    %c0_2 = arith.constant 0 : index
    %2 = vector.load %arg2[%c0_1, %c0_2] : memref<64x5xf32, #tpu.memory_space<vmem>>, vector<64x5xf32>
    %cst = arith.constant dense<0.000000e+00> : vector<64x8xf32>
    %3 = tpu.matmul %2, %1, %cst {dimension_numbers = #tpu.dot_dimension_numbers<[1], [0], [0], [1], [0, 0, 1, 1], [], []>, precision = #tpu.contract_precision<fp32>} : vector<64x5xf32>, vector<5x8xf32>, vector<64x8xf32> -> vector<64x8xf32>
    %c0_3 = arith.constant 0 : index
    %c0_4 = arith.constant 0 : index
    %4 = vector.load %arg3[%c0_3, %c0_4] : memref<64x1xf32, #tpu.memory_space<vmem>>, vector<64x1xf32>
    %5 = vector.broadcast %4 : vector<64x1xf32> to vector<64x8xf32>
    %6 = arith.addf %3, %5 : vector<64x8xf32>
    %cst_5 = arith.constant 0.000000e+00 : f32
    %7 = vector.broadcast %cst_5 : f32 to vector<64x8xf32>
    %8 = arith.maximumf %6, %7 : vector<64x8xf32>
    %c0_6 = arith.constant 0 : index
    %c0_7 = arith.constant 0 : index
    %9 = vector.load %arg4[%c0_6, %c0_7] : memref<32x64xf32, #tpu.memory_space<vmem>>, vector<32x64xf32>
    %cst_8 = arith.constant dense<0.000000e+00> : vector<32x8xf32>
    %10 = tpu.matmul %9, %8, %cst_8 {dimension_numbers = #tpu.dot_dimension_numbers<[1], [0], [0], [1], [0, 0, 1, 1], [], []>, precision = #tpu.contract_precision<fp32>} : vector<32x64xf32>, vector<64x8xf32>, vector<32x8xf32> -> vector<32x8xf32>
    %c0_9 = arith.constant 0 : index
    %c0_10 = arith.constant 0 : index
    %11 = vector.load %arg5[%c0_9, %c0_10] : memref<32x1xf32, #tpu.memory_space<vmem>>, vector<32x1xf32>
    %12 = vector.broadcast %11 : vector<32x1xf32> to vector<32x8xf32>
    %13 = arith.addf %10, %12 : vector<32x8xf32>
    %cst_11 = arith.constant 0.000000e+00 : f32
    %14 = vector.broadcast %cst_11 : f32 to vector<32x8xf32>
    %15 = arith.maximumf %13, %14 : vector<32x8xf32>
    %c0_12 = arith.constant 0 : index
    %c0_13 = arith.constant 0 : index
    %16 = vector.load %arg6[%c0_12, %c0_13] : memref<16x32xf32, #tpu.memory_space<vmem>>, vector<16x32xf32>
    %cst_14 = arith.constant dense<0.000000e+00> : vector<16x8xf32>
    %17 = tpu.matmul %16, %15, %cst_14 {dimension_numbers = #tpu.dot_dimension_numbers<[1], [0], [0], [1], [0, 0, 1, 1], [], []>, precision = #tpu.contract_precision<fp32>} : vector<16x32xf32>, vector<32x8xf32>, vector<16x8xf32> -> vector<16x8xf32>
    %c0_15 = arith.constant 0 : index
    %c0_16 = arith.constant 0 : index
    %18 = vector.load %arg7[%c0_15, %c0_16] : memref<16x1xf32, #tpu.memory_space<vmem>>, vector<16x1xf32>
    %19 = vector.broadcast %18 : vector<16x1xf32> to vector<16x8xf32>
    %20 = arith.addf %17, %19 : vector<16x8xf32>
    %c0_17 = arith.constant 0 : index
    %c0_18 = arith.constant 0 : index
    %21 = vector.load %arg8[%c0_17, %c0_18] : memref<32x16xf32, #tpu.memory_space<vmem>>, vector<32x16xf32>
    %cst_19 = arith.constant dense<0.000000e+00> : vector<32x8xf32>
    %22 = tpu.matmul %21, %20, %cst_19 {dimension_numbers = #tpu.dot_dimension_numbers<[1], [0], [0], [1], [0, 0, 1, 1], [], []>, precision = #tpu.contract_precision<fp32>} : vector<32x16xf32>, vector<16x8xf32>, vector<32x8xf32> -> vector<32x8xf32>
    %c0_20 = arith.constant 0 : index
    %c0_21 = arith.constant 0 : index
    %23 = vector.load %arg9[%c0_20, %c0_21] : memref<32x1xf32, #tpu.memory_space<vmem>>, vector<32x1xf32>
    %24 = vector.broadcast %23 : vector<32x1xf32> to vector<32x8xf32>
    %25 = arith.addf %22, %24 : vector<32x8xf32>
    %cst_22 = arith.constant 0.000000e+00 : f32
    %26 = vector.broadcast %cst_22 : f32 to vector<32x8xf32>
    %27 = arith.maximumf %25, %26 : vector<32x8xf32>
    %c0_23 = arith.constant 0 : index
    %c0_24 = arith.constant 0 : index
    %28 = vector.load %arg10[%c0_23, %c0_24] : memref<64x32xf32, #tpu.memory_space<vmem>>, vector<64x32xf32>
    %cst_25 = arith.constant dense<0.000000e+00> : vector<64x8xf32>
    %29 = tpu.matmul %28, %27, %cst_25 {dimension_numbers = #tpu.dot_dimension_numbers<[1], [0], [0], [1], [0, 0, 1, 1], [], []>, precision = #tpu.contract_precision<fp32>} : vector<64x32xf32>, vector<32x8xf32>, vector<64x8xf32> -> vector<64x8xf32>
    %c0_26 = arith.constant 0 : index
    %c0_27 = arith.constant 0 : index
    %30 = vector.load %arg11[%c0_26, %c0_27] : memref<64x1xf32, #tpu.memory_space<vmem>>, vector<64x1xf32>
    %31 = vector.broadcast %30 : vector<64x1xf32> to vector<64x8xf32>
    %32 = arith.addf %29, %31 : vector<64x8xf32>
    %cst_28 = arith.constant 0.000000e+00 : f32
    %33 = vector.broadcast %cst_28 : f32 to vector<64x8xf32>
    %34 = arith.maximumf %32, %33 : vector<64x8xf32>
    %c0_29 = arith.constant 0 : index
    %c0_30 = arith.constant 0 : index
    %35 = vector.load %arg12[%c0_29, %c0_30] : memref<5x64xf32, #tpu.memory_space<vmem>>, vector<5x64xf32>
    %cst_31 = arith.constant dense<0.000000e+00> : vector<5x8xf32>
    %36 = tpu.matmul %35, %34, %cst_31 {dimension_numbers = #tpu.dot_dimension_numbers<[1], [0], [0], [1], [0, 0, 1, 1], [], []>, precision = #tpu.contract_precision<fp32>} : vector<5x64xf32>, vector<64x8xf32>, vector<5x8xf32> -> vector<5x8xf32>
    %c0_32 = arith.constant 0 : index
    %c0_33 = arith.constant 0 : index
    %37 = vector.load %arg13[%c0_32, %c0_33] : memref<5x1xf32, #tpu.memory_space<vmem>>, vector<5x1xf32>
    %38 = vector.broadcast %37 : vector<5x1xf32> to vector<5x8xf32>
    %39 = arith.addf %36, %38 : vector<5x8xf32>
    %c0_34 = arith.constant 0 : index
    %c0_35 = arith.constant 0 : index
    %40 = vector.load %arg14[%c0_34, %c0_35] : memref<21x8xf32, #tpu.memory_space<vmem>>, vector<16x8xf32>
    tpu.vector_store %arg14[%c0_34, %c0_35], %20 {strides = array<i32>} : memref<21x8xf32, #tpu.memory_space<vmem>>, vector<16x8xf32>,
    %c16 = arith.constant 16 : index
    %c0_36 = arith.constant 0 : index
    %41 = vector.load %arg14[%c16, %c0_36] : memref<21x8xf32, #tpu.memory_space<vmem>>, vector<5x8xf32>
    tpu.vector_store %arg14[%c16, %c0_36], %39 {strides = array<i32>} : memref<21x8xf32, #tpu.memory_space<vmem>>, vector<5x8xf32>,
    return
  }
  func.func @transform_0(%arg0: i32) -> (i32, i32) {
    %c0_i32 = arith.constant 0 : i32
    %c0_i32_0 = arith.constant 0 : i32
    return %arg0, %c0_i32 : i32, i32
  }
  func.func @transform_1(%arg0: i32) -> (i32, i32) {
    %c0_i32 = arith.constant 0 : i32
    %c0_i32_0 = arith.constant 0 : i32
    %c0_i32_1 = arith.constant 0 : i32
    return %c0_i32, %c0_i32_0 : i32, i32
  }
  func.func @transform_2(%arg0: i32) -> (i32, i32) {
    %c0_i32 = arith.constant 0 : i32
    %c0_i32_0 = arith.constant 0 : i32
    %c0_i32_1 = arith.constant 0 : i32
    return %c0_i32, %c0_i32_0 : i32, i32
  }
  func.func @transform_3(%arg0: i32) -> (i32, i32) {
    %c0_i32 = arith.constant 0 : i32
    %c0_i32_0 = arith.constant 0 : i32
    %c0_i32_1 = arith.constant 0 : i32
    return %c0_i32, %c0_i32_0 : i32, i32
  }
  func.func @transform_4(%arg0: i32) -> (i32, i32) {
    %c0_i32 = arith.constant 0 : i32
    %c0_i32_0 = arith.constant 0 : i32
    %c0_i32_1 = arith.constant 0 : i32
    return %c0_i32, %c0_i32_0 : i32, i32
  }
  func.func @transform_5(%arg0: i32) -> (i32, i32) {
    %c0_i32 = arith.constant 0 : i32
    %c0_i32_0 = arith.constant 0 : i32
    %c0_i32_1 = arith.constant 0 : i32
    return %c0_i32, %c0_i32_0 : i32, i32
  }
  func.func @transform_6(%arg0: i32) -> (i32, i32) {
    %c0_i32 = arith.constant 0 : i32
    %c0_i32_0 = arith.constant 0 : i32
    %c0_i32_1 = arith.constant 0 : i32
    return %c0_i32, %c0_i32_0 : i32, i32
  }
  func.func @transform_7(%arg0: i32) -> (i32, i32) {
    %c0_i32 = arith.constant 0 : i32
    %c0_i32_0 = arith.constant 0 : i32
    %c0_i32_1 = arith.constant 0 : i32
    return %c0_i32, %c0_i32_0 : i32, i32
  }
  func.func @transform_8(%arg0: i32) -> (i32, i32) {
    %c0_i32 = arith.constant 0 : i32
    %c0_i32_0 = arith.constant 0 : i32
    %c0_i32_1 = arith.constant 0 : i32
    return %c0_i32, %c0_i32_0 : i32, i32
  }
  func.func @transform_9(%arg0: i32) -> (i32, i32) {
    %c0_i32 = arith.constant 0 : i32
    %c0_i32_0 = arith.constant 0 : i32
    %c0_i32_1 = arith.constant 0 : i32
    return %c0_i32, %c0_i32_0 : i32, i32
  }
  func.func @transform_10(%arg0: i32) -> (i32, i32) {
    %c0_i32 = arith.constant 0 : i32
    %c0_i32_0 = arith.constant 0 : i32
    %c0_i32_1 = arith.constant 0 : i32
    return %c0_i32, %c0_i32_0 : i32, i32
  }
  func.func @transform_11(%arg0: i32) -> (i32, i32) {
    %c0_i32 = arith.constant 0 : i32
    %c0_i32_0 = arith.constant 0 : i32
    %c0_i32_1 = arith.constant 0 : i32
    return %c0_i32, %c0_i32_0 : i32, i32
  }
  func.func @transform_12(%arg0: i32) -> (i32, i32) {
    %c0_i32 = arith.constant 0 : i32
    %c0_i32_0 = arith.constant 0 : i32
    %c0_i32_1 = arith.constant 0 : i32
    return %c0_i32, %c0_i32_0 : i32, i32
  }
  func.func @transform_13(%arg0: i32) -> (i32, i32) {
    %c0_i32 = arith.constant 0 : i32
    %c0_i32_0 = arith.constant 0 : i32
    return %c0_i32, %arg0 : i32, i32
  }
}

</mosaic_0001>

<llo_original>
// kernel: anomaly_detector_forward.1
$region0: #{anomaly_detector_forward.1}
  #allocation0 [shape = 'u32[]', space=smem, size = 0x4, offset = 0x4, fixed_abs, tag = 'smem constant byte address 0x4 - core index']
  #allocation1 [shape = 'u32[72,128]{1,0:T(1,128)}', space=vmem, size = 0x9000, scoped, tag = 'internal scratch']
  %s0 = inlined_call_operand.vmem [shape: f32[8,5], index: 0, kind: input, shape index: {}]
  %s1 = inlined_call_operand.vmem [shape: f32[64,5], index: 1, kind: input, shape index: {}]
  %s2 = inlined_call_operand.vmem [shape: f32[64,1], index: 2, kind: input, shape index: {}]
  %s3 = inlined_call_operand.vmem [shape: f32[32,64], index: 3, kind: input, shape index: {}]
  %s4 = inlined_call_operand.vmem [shape: f32[32,1], index: 4, kind: input, shape index: {}]
  %s5 = inlined_call_operand.vmem [shape: f32[16,32], index: 5, kind: input, shape index: {}]
  %s6 = inlined_call_operand.vmem [shape: f32[16,1], index: 6, kind: input, shape index: {}]
  %s7 = inlined_call_operand.vmem [shape: f32[32,16], index: 7, kind: input, shape index: {}]
  %s8 = inlined_call_operand.vmem [shape: f32[32,1], index: 8, kind: input, shape index: {}]
  %s9 = inlined_call_operand.vmem [shape: f32[64,32], index: 9, kind: input, shape index: {}]
  %s10 = inlined_call_operand.vmem [shape: f32[64,1], index: 10, kind: input, shape index: {}]
  %s11 = inlined_call_operand.vmem [shape: f32[5,64], index: 11, kind: input, shape index: {}]
  %s12 = inlined_call_operand.vmem [shape: f32[5,1], index: 12, kind: input, shape index: {}]
  %s13 = inlined_call_operand.vmem [shape: f32[21,8], index: 13, kind: output, shape index: {}]
  %s14 = sld [smem:[#allocation0]]
  $region62: #{anomaly_detector_forward.1} parent=0
    _
  %s16 = ssub.s32 1, %s14
  %s17 = scalar_select 0, %s16, %s14
  // Predicated region
  $region2: #{anomaly_detector_forward.1} parent=0 // pred_check
    _
  $region3: #{anomaly_detector_forward.1} parent=0 // pred_check_branch
    %19 = sbr.rel (0) target = $region5
  $region4: #{anomaly_detector_forward.1} parent=0 // pred_region
    _
  $region5: #{anomaly_detector_forward.1} parent=0 // pred_fallthru
    _
  // Predicated region
  $region6: #{anomaly_detector_forward.1} parent=0 // pred_check
    _
  $region7: #{anomaly_detector_forward.1} parent=0 // pred_check_branch
    %21 = sbr.rel (0) target = $region9
  $region8: #{anomaly_detector_forward.1} parent=0 // pred_region
    _
  $region9: #{anomaly_detector_forward.1} parent=0 // pred_fallthru
    _
  // Predicated region
  $region10: #{anomaly_detector_forward.1} parent=0 // pred_check
    _
  $region11: #{anomaly_detector_forward.1} parent=0 // pred_check_branch
    %23 = sbr.rel (0) target = $region13
  $region12: #{anomaly_detector_forward.1} parent=0 // pred_region
    _
  $region13: #{anomaly_detector_forward.1} parent=0 // pred_fallthru
    _
  // Predicated region
  $region14: #{anomaly_detector_forward.1} parent=0 // pred_check
    _
  $region15: #{anomaly_detector_forward.1} parent=0 // pred_check_branch
    %25 = sbr.rel (0) target = $region17
  $region16: #{anomaly_detector_forward.1} parent=0 // pred_region
    _
  $region17: #{anomaly_detector_forward.1} parent=0 // pred_fallthru
    _
  // Predicated region
  $region18: #{anomaly_detector_forward.1} parent=0 // pred_check
    _
  $region19: #{anomaly_detector_forward.1} parent=0 // pred_check_branch
    %27 = sbr.rel (0) target = $region21
  $region20: #{anomaly_detector_forward.1} parent=0 // pred_region
    _
  $region21: #{anomaly_detector_forward.1} parent=0 // pred_fallthru
    _
  // Predicated region
  $region22: #{anomaly_detector_forward.1} parent=0 // pred_check
    _
  $region23: #{anomaly_detector_forward.1} parent=0 // pred_check_branch
    %29 = sbr.rel (0) target = $region25
  $region24: #{anomaly_detector_forward.1} parent=0 // pred_region
    _
  $region25: #{anomaly_detector_forward.1} parent=0 // pred_fallthru
    _
  // Predicated region
  $region26: #{anomaly_detector_forward.1} parent=0 // pred_check
    _
  $region27: #{anomaly_detector_forward.1} parent=0 // pred_check_branch
    %31 = sbr.rel (0) target = $region29
  $region28: #{anomaly_detector_forward.1} parent=0 // pred_region
    _
  $region29: #{anomaly_detector_forward.1} parent=0 // pred_fallthru
    _
  // Predicated region
  $region30: #{anomaly_detector_forward.1} parent=0 // pred_check
    _
  $region31: #{anomaly_detector_forward.1} parent=0 // pred_check_branch
    %33 = sbr.rel (0) target = $region33
  $region32: #{anomaly_detector_forward.1} parent=0 // pred_region
    _
  $region33: #{anomaly_detector_forward.1} parent=0 // pred_fallthru
    _
  // Predicated region
  $region34: #{anomaly_detector_forward.1} parent=0 // pred_check
    _
  $region35: #{anomaly_detector_forward.1} parent=0 // pred_check_branch
    %35 = sbr.rel (0) target = $region37
  $region36: #{anomaly_detector_forward.1} parent=0 // pred_region
    _
  $region37: #{anomaly_detector_forward.1} parent=0 // pred_fallthru
    _
  // Predicated region
  $region38: #{anomaly_detector_forward.1} parent=0 // pred_check
    _
  $region39: #{anomaly_detector_forward.1} parent=0 // pred_check_branch
    %37 = sbr.rel (0) target = $region41
  $region40: #{anomaly_detector_forward.1} parent=0 // pred_region
    _
  $region41: #{anomaly_detector_forward.1} parent=0 // pred_fallthru
    _
  // Predicated region
  $region42: #{anomaly_detector_forward.1} parent=0 // pred_check
    _
  $region43: #{anomaly_detector_forward.1} parent=0 // pred_check_branch
    %39 = sbr.rel (0) target = $region45
  $region44: #{anomaly_detector_forward.1} parent=0 // pred_region
    _
  $region45: #{anomaly_detector_forward.1} parent=0 // pred_fallthru
    _
  // Predicated region
  $region46: #{anomaly_detector_forward.1} parent=0 // pred_check
    _
  $region47: #{anomaly_detector_forward.1} parent=0 // pred_check_branch
    %41 = sbr.rel (0) target = $region49
  $region48: #{anomaly_detector_forward.1} parent=0 // pred_region
    _
  $region49: #{anomaly_detector_forward.1} parent=0 // pred_fallthru
    _
  // Predicated region
  $region50: #{anomaly_detector_forward.1} parent=0 // pred_check
    _
  $region51: #{anomaly_detector_forward.1} parent=0 // pred_check_branch
    %43 = sbr.rel (0) target = $region53
  $region52: #{anomaly_detector_forward.1} parent=0 // pred_region
    _
  $region53: #{anomaly_detector_forward.1} parent=0 // pred_fallthru
    _
  %v44 = vld [vmem:[%s0] sm:$0xff]
  %v45 = vld [vmem:[%s1] sm:$0xff]
  %v46 = vld [vmem:[%s1 + $0x8] sm:$0xff]
  %v47 = vld [vmem:[%s1 + $0x10] sm:$0xff]
  %v48 = vld [vmem:[%s1 + $0x18] sm:$0xff]
  %v49 = vld [vmem:[%s1 + $0x20] sm:$0xff]
  %v50 = vld [vmem:[%s1 + $0x28] sm:$0xff]
  %v51 = vld [vmem:[%s1 + $0x30] sm:$0xff]
  %v52 = vld [vmem:[%s1 + $0x38] sm:$0xff]
  %v53 = vld [vmem:[%s2] sm:$0xff]
  %v54 = vld [vmem:[%s2 + $0x8] sm:$0xff]
  %v55 = vld [vmem:[%s2 + $0x10] sm:$0xff]
  %v56 = vld [vmem:[%s2 + $0x18] sm:$0xff]
  %v57 = vld [vmem:[%s2 + $0x20] sm:$0xff]
  %v58 = vld [vmem:[%s2 + $0x28] sm:$0xff]
  %v59 = vld [vmem:[%s2 + $0x30] sm:$0xff]
  %v60 = vld [vmem:[%s2 + $0x38] sm:$0xff]
  %62 = vset.pattern.permute.xlu0 0
  %63 = vperm.xlu0 %62, %v53
  %v64 = vpop.permute.xlu0 %63
  %67 = vset.pattern.permute.xlu0 0
  %68 = vperm.xlu0 %67, %v54
  %v69 = vpop.permute.xlu0 %68
  %72 = vset.pattern.permute.xlu0 0
  %73 = vperm.xlu0 %72, %v55
  %v74 = vpop.permute.xlu0 %73
  %77 = vset.pattern.permute.xlu0 0
  %78 = vperm.xlu0 %77, %v56
  %v79 = vpop.permute.xlu0 %78
  %82 = vset.pattern.permute.xlu0 0
  %83 = vperm.xlu0 %82, %v57
  %v84 = vpop.permute.xlu0 %83
  %87 = vset.pattern.permute.xlu0 0
  %88 = vperm.xlu0 %87, %v58
  %v89 = vpop.permute.xlu0 %88
  %92 = vset.pattern.permute.xlu0 0
  %93 = vperm.xlu0 %92, %v59
  %v94 = vpop.permute.xlu0 %93
  %97 = vset.pattern.permute.xlu0 0
  %98 = vperm.xlu0 %97, %v60
  %v99 = vpop.permute.xlu0 %98
  %vm101 = vcmask 39936
  %v103 = vsel %vm101, %v45, 0
  %v106 = vsel %vm101, %v46, 0
  %v109 = vsel %vm101, %v47, 0
  %v112 = vsel %vm101, %v48, 0
  %v115 = vsel %vm101, %v49, 0
  %v118 = vsel %vm101, %v50, 0
  %v121 = vsel %vm101, %v51, 0
  %v124 = vsel %vm101, %v52, 0
  %v127 = vsel %vm101, %v44, 0
  %129 = vmatpush.xpose.msra.mxu0 0.0
  %130 = vmatpush.xpose.msra.mxu0 0.0
  %131 = vmatpush.xpose.msra.mxu0 0.0
  %132 = vmatpush.xpose.msra.mxu0 0.0
  %133 = vmatpush.xpose.msra.mxu0 0.0
  %134 = vmatpush.xpose.msra.mxu0 0.0
  %135 = vmatpush.xpose.msra.mxu0 0.0
  %136 = vmatpush.xpose.msra.mxu0 0.0
  %137 = vmatpush.xpose.msra.mxu0 0.0
  %138 = vmatpush.xpose.msra.mxu0 0.0
  %139 = vmatpush.xpose.msra.mxu0 0.0
  %140 = vmatpush.xpose.msra.mxu0 0.0
  %141 = vmatpush.xpose.msra.mxu0 0.0
  %142 = vmatpush.xpose.msra.mxu0 0.0
  %143 = vmatpush.xpose.msra.mxu0 0.0
  %v144 = vand.u32 %v127, 4294901760
  %145 = vmatpush.xpose.msra.mxu0 %v144
  %v146 = vand.u32 %v103, 4294901760
  %v147 = vsub.f32 %v103, %v146
  %v148 = vand.u32 %v147, 4294901760
  %v149 = vsub.f32 %v147, %v148
  %v150 = vand.u32 %v149, 4294901760
  %151 = vmatmul.f32.gmra.mxu0 %v150
  %v152 = vpop.f32.mrf.mxu0
  %v153 = vadd.f32 %v64, %v152
  %v154 = vand.u32 %v106, 4294901760
  %v155 = vsub.f32 %v106, %v154
  %v156 = vand.u32 %v155, 4294901760
  %v157 = vsub.f32 %v155, %v156
  %v158 = vand.u32 %v157, 4294901760
  %159 = vmatmul.f32.gmra.mxu0 %v158
  %v160 = vpop.f32.mrf.mxu0
  %v161 = vadd.f32 %v69, %v160
  %v162 = vand.u32 %v109, 4294901760
  %v163 = vsub.f32 %v109, %v162
  %v164 = vand.u32 %v163, 4294901760
  %v165 = vsub.f32 %v163, %v164
  %v166 = vand.u32 %v165, 4294901760
  %167 = vmatmul.f32.gmra.mxu0 %v166
  %v168 = vpop.f32.mrf.mxu0
  %v169 = vadd.f32 %v74, %v168
  %v170 = vand.u32 %v112, 4294901760
  %v171 = vsub.f32 %v112, %v170
  %v172 = vand.u32 %v171, 4294901760
  %v173 = vsub.f32 %v171, %v172
  %v174 = vand.u32 %v173, 4294901760
  %175 = vmatmul.f32.gmra.mxu0 %v174
  %v176 = vpop.f32.mrf.mxu0
  %v177 = vadd.f32 %v79, %v176
  %v178 = vand.u32 %v115, 4294901760
  %v179 = vsub.f32 %v115, %v178
  %v180 = vand.u32 %v179, 4294901760
  %v181 = vsub.f32 %v179, %v180
  %v182 = vand.u32 %v181, 4294901760
  %183 = vmatmul.f32.gmra.mxu0 %v182
  %v184 = vpop.f32.mrf.mxu0
  %v185 = vadd.f32 %v84, %v184
  %v186 = vand.u32 %v118, 4294901760
  %v187 = vsub.f32 %v118, %v186
  %v188 = vand.u32 %v187, 4294901760
  %v189 = vsub.f32 %v187, %v188
  %v190 = vand.u32 %v189, 4294901760
  %191 = vmatmul.f32.gmra.mxu0 %v190
  %v192 = vpop.f32.mrf.mxu0
  %v193 = vadd.f32 %v89, %v192
  %v194 = vand.u32 %v121, 4294901760
  %v195 = vsub.f32 %v121, %v194
  %v196 = vand.u32 %v195, 4294901760
  %v197 = vsub.f32 %v195, %v196
  %v198 = vand.u32 %v197, 4294901760
  %199 = vmatmul.f32.gmra.mxu0 %v198
  %v200 = vpop.f32.mrf.mxu0
  %v201 = vadd.f32 %v94, %v200
  %v202 = vand.u32 %v124, 4294901760
  %v203 = vsub.f32 %v124, %v202
  %v204 = vand.u32 %v203, 4294901760
  %v205 = vsub.f32 %v203, %v204
  %v206 = vand.u32 %v205, 4294901760
  %207 = vmatmul.f32.gmra.mxu0 %v206
  %v208 = vpop.f32.mrf.mxu0
  %v209 = vadd.f32 %v99, %v208
  %210 = vdwg.mxu0
  %211 = vmatpush.xpose.msra.mxu0 0.0
  %212 = vmatpush.xpose.msra.mxu0 0.0
  %213 = vmatpush.xpose.msra.mxu0 0.0
  %214 = vmatpush.xpose.msra.mxu0 0.0
  %215 = vmatpush.xpose.msra.mxu0 0.0
  %216 = vmatpush.xpose.msra.mxu0 0.0
  %217 = vmatpush.xpose.msra.mxu0 0.0
  %218 = vmatpush.xpose.msra.mxu0 0.0
  %219 = vmatpush.xpose.msra.mxu0 0.0
  %220 = vmatpush.xpose.msra.mxu0 0.0
  %221 = vmatpush.xpose.msra.mxu0 0.0
  %222 = vmatpush.xpose.msra.mxu0 0.0
  %223 = vmatpush.xpose.msra.mxu0 0.0
  %224 = vmatpush.xpose.msra.mxu0 0.0
  %225 = vmatpush.xpose.msra.mxu0 0.0
  %v226 = vand.u32 %v127, 4294901760
  %v227 = vsub.f32 %v127, %v226
  %v228 = vand.u32 %v227, 4294901760
  %v229 = vsub.f32 %v227, %v228
  %v230 = vand.u32 %v229, 4294901760
  %231 = vmatpush.xpose.msra.mxu0 %v230
  %v232 = vand.u32 %v103, 4294901760
  %233 = vmatmul.f32.gmra.mxu0 %v232
  %v234 = vpop.f32.mrf.mxu0
  %v235 = vadd.f32 %v153, %v234
  %v236 = vand.u32 %v106, 4294901760
  %237 = vmatmul.f32.gmra.mxu0 %v236
  %v238 = vpop.f32.mrf.mxu0
  %v239 = vadd.f32 %v161, %v238
  %v240 = vand.u32 %v109, 4294901760
  %241 = vmatmul.f32.gmra.mxu0 %v240
  %v242 = vpop.f32.mrf.mxu0
  %v243 = vadd.f32 %v169, %v242
  %v244 = vand.u32 %v112, 4294901760
  %245 = vmatmul.f32.gmra.mxu0 %v244
  %v246 = vpop.f32.mrf.mxu0
  %v247 = vadd.f32 %v177, %v246
  %v248 = vand.u32 %v115, 4294901760
  %249 = vmatmul.f32.gmra.mxu0 %v248
  %v250 = vpop.f32.mrf.mxu0
  %v251 = vadd.f32 %v185, %v250
  %v252 = vand.u32 %v118, 4294901760
  %253 = vmatmul.f32.gmra.mxu0 %v252
  %v254 = vpop.f32.mrf.mxu0
  %v255 = vadd.f32 %v193, %v254
  %v256 = vand.u32 %v121, 4294901760
  %257 = vmatmul.f32.gmra.mxu0 %v256
  %v258 = vpop.f32.mrf.mxu0
  %v259 = vadd.f32 %v201, %v258
  %v260 = vand.u32 %v124, 4294901760
  %261 = vmatmul.f32.gmra.mxu0 %v260
  %v262 = vpop.f32.mrf.mxu0
  %v263 = vadd.f32 %v209, %v262
  %264 = vdwg.mxu0
  %265 = vmatpush.xpose.msra.mxu0 0.0
  %266 = vmatpush.xpose.msra.mxu0 0.0
  %267 = vmatpush.xpose.msra.mxu0 0.0
  %268 = vmatpush.xpose.msra.mxu0 0.0
  %269 = vmatpush.xpose.msra.mxu0 0.0
  %270 = vmatpush.xpose.msra.mxu0 0.0
  %271 = vmatpush.xpose.msra.mxu0 0.0
  %272 = vmatpush.xpose.msra.mxu0 0.0
  %273 = vmatpush.xpose.msra.mxu0 0.0
  %274 = vmatpush.xpose.msra.mxu0 0.0
  %275 = vmatpush.xpose.msra.mxu0 0.0
  %276 = vmatpush.xpose.msra.mxu0 0.0
  %277 = vmatpush.xpose.msra.mxu0 0.0
  %278 = vmatpush.xpose.msra.mxu0 0.0
  %279 = vmatpush.xpose.msra.mxu0 0.0
  %v280 = vand.u32 %v127, 4294901760
  %v281 = vsub.f32 %v127, %v280
  %282 = vmatpush.xpose.msra.mxu0 %v281
  %v283 = vand.u32 %v103, 4294901760
  %v284 = vsub.f32 %v103, %v283
  %285 = vmatmul.f32.gmra.mxu0 %v284
  %v286 = vpop.f32.mrf.mxu0
  %v287 = vadd.f32 %v235, %v286
  %v288 = vand.u32 %v106, 4294901760
  %v289 = vsub.f32 %v106, %v288
  %290 = vmatmul.f32.gmra.mxu0 %v289
  %v291 = vpop.f32.mrf.mxu0
  %v292 = vadd.f32 %v239, %v291
  %v293 = vand.u32 %v109, 4294901760
  %v294 = vsub.f32 %v109, %v293
  %295 = vmatmul.f32.gmra.mxu0 %v294
  %v296 = vpop.f32.mrf.mxu0
  %v297 = vadd.f32 %v243, %v296
  %v298 = vand.u32 %v112, 4294901760
  %v299 = vsub.f32 %v112, %v298
  %300 = vmatmul.f32.gmra.mxu0 %v299
  %v301 = vpop.f32.mrf.mxu0
  %v302 = vadd.f32 %v247, %v301
  %v303 = vand.u32 %v115, 4294901760
  %v304 = vsub.f32 %v115, %v303
  %305 = vmatmul.f32.gmra.mxu0 %v304
  %v306 = vpop.f32.mrf.mxu0
  %v307 = vadd.f32 %v251, %v306
  %v308 = vand.u32 %v118, 4294901760
  %v309 = vsub.f32 %v118, %v308
  %310 = vmatmul.f32.gmra.mxu0 %v309
  %v311 = vpop.f32.mrf.mxu0
  %v312 = vadd.f32 %v255, %v311
  %v313 = vand.u32 %v121, 4294901760
  %v314 = vsub.f32 %v121, %v313
  %315 = vmatmul.f32.gmra.mxu0 %v314
  %v316 = vpop.f32.mrf.mxu0
  %v317 = vadd.f32 %v259, %v316
  %v318 = vand.u32 %v124, 4294901760
  %v319 = vsub.f32 %v124, %v318
  %320 = vmatmul.f32.gmra.mxu0 %v319
  %v321 = vpop.f32.mrf.mxu0
  %v322 = vadd.f32 %v263, %v321
  %323 = vdwg.mxu0
  %324 = vmatpush.xpose.msra.mxu0 0.0
  %325 = vmatpush.xpose.msra.mxu0 0.0
  %326 = vmatpush.xpose.msra.mxu0 0.0
  %327 = vmatpush.xpose.msra.mxu0 0.0
  %328 = vmatpush.xpose.msra.mxu0 0.0
  %329 = vmatpush.xpose.msra.mxu0 0.0
  %330 = vmatpush.xpose.msra.mxu0 0.0
  %331 = vmatpush.xpose.msra.mxu0 0.0
  %332 = vmatpush.xpose.msra.mxu0 0.0
  %333 = vmatpush.xpose.msra.mxu0 0.0
  %334 = vmatpush.xpose.msra.mxu0 0.0
  %335 = vmatpush.xpose.msra.mxu0 0.0
  %336 = vmatpush.xpose.msra.mxu0 0.0
  %337 = vmatpush.xpose.msra.mxu0 0.0
  %338 = vmatpush.xpose.msra.mxu0 0.0
  %v339 = vand.u32 %v127, 4294901760
  %340 = vmatpush.xpose.msra.mxu0 %v339
  %v341 = vand.u32 %v103, 4294901760
  %v342 = vsub.f32 %v103, %v341
  %v343 = vand.u32 %v342, 4294901760
  %344 = vmatmul.f32.gmra.mxu0 %v343
  %v345 = vpop.f32.mrf.mxu0
  %v346 = vadd.f32 %v287, %v345
  %v347 = vand.u32 %v106, 4294901760
  %v348 = vsub.f32 %v106, %v347
  %v349 = vand.u32 %v348, 4294901760
  %350 = vmatmul.f32.gmra.mxu0 %v349
  %v351 = vpop.f32.mrf.mxu0
  %v352 = vadd.f32 %v292, %v351
  %v353 = vand.u32 %v109, 4294901760
  %v354 = vsub.f32 %v109, %v353
  %v355 = vand.u32 %v354, 4294901760
  %356 = vmatmul.f32.gmra.mxu0 %v355
  %v357 = vpop.f32.mrf.mxu0
  %v358 = vadd.f32 %v297, %v357
  %v359 = vand.u32 %v112, 4294901760
  %v360 = vsub.f32 %v112, %v359
  %v361 = vand.u32 %v360, 4294901760
  %362 = vmatmul.f32.gmra.mxu0 %v361
  %v363 = vpop.f32.mrf.mxu0
  %v364 = vadd.f32 %v302, %v363
  %v365 = vand.u32 %v115, 4294901760
  %v366 = vsub.f32 %v115, %v365
  %v367 = vand.u32 %v366, 4294901760
  %368 = vmatmul.f32.gmra.mxu0 %v367
  %v369 = vpop.f32.mrf.mxu0
  %v370 = vadd.f32 %v307, %v369
  %v371 = vand.u32 %v118, 4294901760
  %v372 = vsub.f32 %v118, %v371
  %v373 = vand.u32 %v372, 4294901760
  %374 = vmatmul.f32.gmra.mxu0 %v373
  %v375 = vpop.f32.mrf.mxu0
  %v376 = vadd.f32 %v312, %v375
  %v377 = vand.u32 %v121, 4294901760
  %v378 = vsub.f32 %v121, %v377
  %v379 = vand.u32 %v378, 4294901760
  %380 = vmatmul.f32.gmra.mxu0 %v379
  %v381 = vpop.f32.mrf.mxu0
  %v382 = vadd.f32 %v317, %v381
  %v383 = vand.u32 %v124, 4294901760
  %v384 = vsub.f32 %v124, %v383
  %v385 = vand.u32 %v384, 4294901760
  %386 = vmatmul.f32.gmra.mxu0 %v385
  %v387 = vpop.f32.mrf.mxu0
  %v388 = vadd.f32 %v322, %v387
  %389 = vdwg.mxu0
  %390 = vmatpush.xpose.msra.mxu0 0.0
  %391 = vmatpush.xpose.msra.mxu0 0.0
  %392 = vmatpush.xpose.msra.mxu0 0.0
  %393 = vmatpush.xpose.msra.mxu0 0.0
  %394 = vmatpush.xpose.msra.mxu0 0.0
  %395 = vmatpush.xpose.msra.mxu0 0.0
  %396 = vmatpush.xpose.msra.mxu0 0.0
  %397 = vmatpush.xpose.msra.mxu0 0.0
  %398 = vmatpush.xpose.msra.mxu0 0.0
  %399 = vmatpush.xpose.msra.mxu0 0.0
  %400 = vmatpush.xpose.msra.mxu0 0.0
  %401 = vmatpush.xpose.msra.mxu0 0.0
  %402 = vmatpush.xpose.msra.mxu0 0.0
  %403 = vmatpush.xpose.msra.mxu0 0.0
  %404 = vmatpush.xpose.msra.mxu0 0.0
  %v405 = vand.u32 %v127, 4294901760
  %v406 = vsub.f32 %v127, %v405
  %v407 = vand.u32 %v406, 4294901760
  %408 = vmatpush.xpose.msra.mxu0 %v407
  %v409 = vand.u32 %v103, 4294901760
  %410 = vmatmul.f32.gmra.mxu0 %v409
  %v411 = vpop.f32.mrf.mxu0
  %v412 = vadd.f32 %v346, %v411
  %v413 = vand.u32 %v106, 4294901760
  %414 = vmatmul.f32.gmra.mxu0 %v413
  %v415 = vpop.f32.mrf.mxu0
  %v416 = vadd.f32 %v352, %v415
  %v417 = vand.u32 %v109, 4294901760
  %418 = vmatmul.f32.gmra.mxu0 %v417
  %v419 = vpop.f32.mrf.mxu0
  %v420 = vadd.f32 %v358, %v419
  %v421 = vand.u32 %v112, 4294901760
  %422 = vmatmul.f32.gmra.mxu0 %v421
  %v423 = vpop.f32.mrf.mxu0
  %v424 = vadd.f32 %v364, %v423
  %v425 = vand.u32 %v115, 4294901760
  %426 = vmatmul.f32.gmra.mxu0 %v425
  %v427 = vpop.f32.mrf.mxu0
  %v428 = vadd.f32 %v370, %v427
  %v429 = vand.u32 %v118, 4294901760
  %430 = vmatmul.f32.gmra.mxu0 %v429
  %v431 = vpop.f32.mrf.mxu0
  %v432 = vadd.f32 %v376, %v431
  %v433 = vand.u32 %v121, 4294901760
  %434 = vmatmul.f32.gmra.mxu0 %v433
  %v435 = vpop.f32.mrf.mxu0
  %v436 = vadd.f32 %v382, %v435
  %v437 = vand.u32 %v124, 4294901760
  %438 = vmatmul.f32.gmra.mxu0 %v437
  %v439 = vpop.f32.mrf.mxu0
  %v440 = vadd.f32 %v388, %v439
  %441 = vdwg.mxu0
  %442 = vmatpush.xpose.msra.mxu0 0.0
  %443 = vmatpush.xpose.msra.mxu0 0.0
  %444 = vmatpush.xpose.msra.mxu0 0.0
  %445 = vmatpush.xpose.msra.mxu0 0.0
  %446 = vmatpush.xpose.msra.mxu0 0.0
  %447 = vmatpush.xpose.msra.mxu0 0.0
  %448 = vmatpush.xpose.msra.mxu0 0.0
  %449 = vmatpush.xpose.msra.mxu0 0.0
  %450 = vmatpush.xpose.msra.mxu0 0.0
  %451 = vmatpush.xpose.msra.mxu0 0.0
  %452 = vmatpush.xpose.msra.mxu0 0.0
  %453 = vmatpush.xpose.msra.mxu0 0.0
  %454 = vmatpush.xpose.msra.mxu0 0.0
  %455 = vmatpush.xpose.msra.mxu0 0.0
  %456 = vmatpush.xpose.msra.mxu0 0.0
  %v457 = vand.u32 %v127, 4294901760
  %458 = vmatpush.xpose.msra.mxu0 %v457
  %v459 = vand.u32 %v103, 4294901760
  %460 = vmatmul.f32.gmra.mxu0 %v459
  %v461 = vpop.f32.mrf.mxu0
  %v462 = vadd.f32 %v412, %v461
  %v463 = vand.u32 %v106, 4294901760
  %464 = vmatmul.f32.gmra.mxu0 %v463
  %v465 = vpop.f32.mrf.mxu0
  %v466 = vadd.f32 %v416, %v465
  %v467 = vand.u32 %v109, 4294901760
  %468 = vmatmul.f32.gmra.mxu0 %v467
  %v469 = vpop.f32.mrf.mxu0
  %v470 = vadd.f32 %v420, %v469
  %v471 = vand.u32 %v112, 4294901760
  %472 = vmatmul.f32.gmra.mxu0 %v471
  %v473 = vpop.f32.mrf.mxu0
  %v474 = vadd.f32 %v424, %v473
  %v475 = vand.u32 %v115, 4294901760
  %476 = vmatmul.f32.gmra.mxu0 %v475
  %v477 = vpop.f32.mrf.mxu0
  %v478 = vadd.f32 %v428, %v477
  %v479 = vand.u32 %v118, 4294901760
  %480 = vmatmul.f32.gmra.mxu0 %v479
  %v481 = vpop.f32.mrf.mxu0
  %v482 = vadd.f32 %v432, %v481
  %v483 = vand.u32 %v121, 4294901760
  %484 = vmatmul.f32.gmra.mxu0 %v483
  %v485 = vpop.f32.mrf.mxu0
  %v486 = vadd.f32 %v436, %v485
  %v487 = vand.u32 %v124, 4294901760
  %488 = vmatmul.f32.gmra.mxu0 %v487
  %v489 = vpop.f32.mrf.mxu0
  %v490 = vadd.f32 %v440, %v489
  %491 = vdwg.mxu0
  %v492 = vmax.f32 %v462, 0.0
  %v493 = vmax.f32 %v466, 0.0
  %v494 = vmax.f32 %v470, 0.0
  %v495 = vmax.f32 %v474, 0.0
  %v496 = vmax.f32 %v478, 0.0
  %v497 = vmax.f32 %v482, 0.0
  %v498 = vmax.f32 %v486, 0.0
  %v499 = vmax.f32 %v490, 0.0
  %v500 = vld [vmem:[%s3] sm:$0xff]
  %v501 = vld [vmem:[%s3 + $0x8] sm:$0xff]
  %v502 = vld [vmem:[%s3 + $0x10] sm:$0xff]
  %v503 = vld [vmem:[%s3 + $0x18] sm:$0xff]
  %v504 = vld [vmem:[%s4] sm:$0xff]
  %v505 = vld [vmem:[%s4 + $0x8] sm:$0xff]
  %v506 = vld [vmem:[%s4 + $0x10] sm:$0xff]
  %v507 = vld [vmem:[%s4 + $0x18] sm:$0xff]
  %509 = vset.pattern.permute.xlu0 0
  %510 = vperm.xlu0 %509, %v504
  %v511 = vpop.permute.xlu0 %510
  %514 = vset.pattern.permute.xlu0 0
  %515 = vperm.xlu0 %514, %v505
  %v516 = vpop.permute.xlu0 %515
  %519 = vset.pattern.permute.xlu0 0
  %520 = vperm.xlu0 %519, %v506
  %v521 = vpop.permute.xlu0 %520
  %524 = vset.pattern.permute.xlu0 0
  %525 = vperm.xlu0 %524, %v507
  %v526 = vpop.permute.xlu0 %525
  %vm528 = vcmask 523264
  %v530 = vsel %vm528, %v500, 0
  %v533 = vsel %vm528, %v501, 0
  %v536 = vsel %vm528, %v502, 0
  %v539 = vsel %vm528, %v503, 0
  %541 = vmatpush.msra.mxu0 0.0
  %542 = vmatpush.msra.mxu0 0.0
  %543 = vmatpush.msra.mxu0 0.0
  %544 = vmatpush.msra.mxu0 0.0
  %545 = vmatpush.msra.mxu0 0.0
  %546 = vmatpush.msra.mxu0 0.0
  %547 = vmatpush.msra.mxu0 0.0
  %548 = vmatpush.msra.mxu0 0.0
  %v549 = vand.u32 %v499, 4294901760
  %550 = vmatpush.msra.mxu0 %v549
  %v551 = vand.u32 %v498, 4294901760
  %552 = vmatpush.msra.mxu0 %v551
  %v553 = vand.u32 %v497, 4294901760
  %554 = vmatpush.msra.mxu0 %v553
  %v555 = vand.u32 %v496, 4294901760
  %556 = vmatpush.msra.mxu0 %v555
  %v557 = vand.u32 %v495, 4294901760
  %558 = vmatpush.msra.mxu0 %v557
  %v559 = vand.u32 %v494, 4294901760
  %560 = vmatpush.msra.mxu0 %v559
  %v561 = vand.u32 %v493, 4294901760
  %562 = vmatpush.msra.mxu0 %v561
  %v563 = vand.u32 %v492, 4294901760
  %564 = vmatpush.msra.mxu0 %v563
  %v565 = vand.u32 %v530, 4294901760
  %v566 = vsub.f32 %v530, %v565
  %v567 = vand.u32 %v566, 4294901760
  %v568 = vsub.f32 %v566, %v567
  %v569 = vand.u32 %v568, 4294901760
  %570 = vmatmul.f32.gmra.mxu0 %v569
  %v571 = vpop.f32.mrf.mxu0
  %v572 = vadd.f32 %v511, %v571
  %v573 = vand.u32 %v533, 4294901760
  %v574 = vsub.f32 %v533, %v573
  %v575 = vand.u32 %v574, 4294901760
  %v576 = vsub.f32 %v574, %v575
  %v577 = vand.u32 %v576, 4294901760
  %578 = vmatmul.f32.gmra.mxu0 %v577
  %v579 = vpop.f32.mrf.mxu0
  %v580 = vadd.f32 %v516, %v579
  %v581 = vand.u32 %v536, 4294901760
  %v582 = vsub.f32 %v536, %v581
  %v583 = vand.u32 %v582, 4294901760
  %v584 = vsub.f32 %v582, %v583
  %v585 = vand.u32 %v584, 4294901760
  %586 = vmatmul.f32.gmra.mxu0 %v585
  %v587 = vpop.f32.mrf.mxu0
  %v588 = vadd.f32 %v521, %v587
  %v589 = vand.u32 %v539, 4294901760
  %v590 = vsub.f32 %v539, %v589
  %v591 = vand.u32 %v590, 4294901760
  %v592 = vsub.f32 %v590, %v591
  %v593 = vand.u32 %v592, 4294901760
  %594 = vmatmul.f32.gmra.mxu0 %v593
  %v595 = vpop.f32.mrf.mxu0
  %v596 = vadd.f32 %v526, %v595
  %597 = vdwg.mxu0
  %598 = vmatpush.msra.mxu0 0.0
  %599 = vmatpush.msra.mxu0 0.0
  %600 = vmatpush.msra.mxu0 0.0
  %601 = vmatpush.msra.mxu0 0.0
  %602 = vmatpush.msra.mxu0 0.0
  %603 = vmatpush.msra.mxu0 0.0
  %604 = vmatpush.msra.mxu0 0.0
  %605 = vmatpush.msra.mxu0 0.0
  %v606 = vand.u32 %v499, 4294901760
  %v607 = vsub.f32 %v499, %v606
  %v608 = vand.u32 %v607, 4294901760
  %v609 = vsub.f32 %v607, %v608
  %v610 = vand.u32 %v609, 4294901760
  %611 = vmatpush.msra.mxu0 %v610
  %v612 = vand.u32 %v498, 4294901760
  %v613 = vsub.f32 %v498, %v612
  %v614 = vand.u32 %v613, 4294901760
  %v615 = vsub.f32 %v613, %v614
  %v616 = vand.u32 %v615, 4294901760
  %617 = vmatpush.msra.mxu0 %v616
  %v618 = vand.u32 %v497, 4294901760
  %v619 = vsub.f32 %v497, %v618
  %v620 = vand.u32 %v619, 4294901760
  %v621 = vsub.f32 %v619, %v620
  %v622 = vand.u32 %v621, 4294901760
  %623 = vmatpush.msra.mxu0 %v622
  %v624 = vand.u32 %v496, 4294901760
  %v625 = vsub.f32 %v496, %v624
  %v626 = vand.u32 %v625, 4294901760
  %v627 = vsub.f32 %v625, %v626
  %v628 = vand.u32 %v627, 4294901760
  %629 = vmatpush.msra.mxu0 %v628
  %v630 = vand.u32 %v495, 4294901760
  %v631 = vsub.f32 %v495, %v630
  %v632 = vand.u32 %v631, 4294901760
  %v633 = vsub.f32 %v631, %v632
  %v634 = vand.u32 %v633, 4294901760
  %635 = vmatpush.msra.mxu0 %v634
  %v636 = vand.u32 %v494, 4294901760
  %v637 = vsub.f32 %v494, %v636
  %v638 = vand.u32 %v637, 4294901760
  %v639 = vsub.f32 %v637, %v638
  %v640 = vand.u32 %v639, 4294901760
  %641 = vmatpush.msra.mxu0 %v640
  %v642 = vand.u32 %v493, 4294901760
  %v643 = vsub.f32 %v493, %v642
  %v644 = vand.u32 %v643, 4294901760
  %v645 = vsub.f32 %v643, %v644
  %v646 = vand.u32 %v645, 4294901760
  %647 = vmatpush.msra.mxu0 %v646
  %v648 = vand.u32 %v492, 4294901760
  %v649 = vsub.f32 %v492, %v648
  %v650 = vand.u32 %v649, 4294901760
  %v651 = vsub.f32 %v649, %v650
  %v652 = vand.u32 %v651, 4294901760
  %653 = vmatpush.msra.mxu0 %v652
  %v654 = vand.u32 %v530, 4294901760
  %655 = vmatmul.f32.gmra.mxu0 %v654
  %v656 = vpop.f32.mrf.mxu0
  %v657 = vadd.f32 %v572, %v656
  %v658 = vand.u32 %v533, 4294901760
  %659 = vmatmul.f32.gmra.mxu0 %v658
  %v660 = vpop.f32.mrf.mxu0
  %v661 = vadd.f32 %v580, %v660
  %v662 = vand.u32 %v536, 4294901760
  %663 = vmatmul.f32.gmra.mxu0 %v662
  %v664 = vpop.f32.mrf.mxu0
  %v665 = vadd.f32 %v588, %v664
  %v666 = vand.u32 %v539, 4294901760
  %667 = vmatmul.f32.gmra.mxu0 %v666
  %v668 = vpop.f32.mrf.mxu0
  %v669 = vadd.f32 %v596, %v668
  %670 = vdwg.mxu0
  %671 = vmatpush.msra.mxu0 0.0
  %672 = vmatpush.msra.mxu0 0.0
  %673 = vmatpush.msra.mxu0 0.0
  %674 = vmatpush.msra.mxu0 0.0
  %675 = vmatpush.msra.mxu0 0.0
  %676 = vmatpush.msra.mxu0 0.0
  %677 = vmatpush.msra.mxu0 0.0
  %678 = vmatpush.msra.mxu0 0.0
  %v679 = vand.u32 %v499, 4294901760
  %v680 = vsub.f32 %v499, %v679
  %681 = vmatpush.msra.mxu0 %v680
  %v682 = vand.u32 %v498, 4294901760
  %v683 = vsub.f32 %v498, %v682
  %684 = vmatpush.msra.mxu0 %v683
  %v685 = vand.u32 %v497, 4294901760
  %v686 = vsub.f32 %v497, %v685
  %687 = vmatpush.msra.mxu0 %v686
  %v688 = vand.u32 %v496, 4294901760
  %v689 = vsub.f32 %v496, %v688
  %690 = vmatpush.msra.mxu0 %v689
  %v691 = vand.u32 %v495, 4294901760
  %v692 = vsub.f32 %v495, %v691
  %693 = vmatpush.msra.mxu0 %v692
  %v694 = vand.u32 %v494, 4294901760
  %v695 = vsub.f32 %v494, %v694
  %696 = vmatpush.msra.mxu0 %v695
  %v697 = vand.u32 %v493, 4294901760
  %v698 = vsub.f32 %v493, %v697
  %699 = vmatpush.msra.mxu0 %v698
  %v700 = vand.u32 %v492, 4294901760
  %v701 = vsub.f32 %v492, %v700
  %702 = vmatpush.msra.mxu0 %v701
  %v703 = vand.u32 %v530, 4294901760
  %v704 = vsub.f32 %v530, %v703
  %705 = vmatmul.f32.gmra.mxu0 %v704
  %v706 = vpop.f32.mrf.mxu0
  %v707 = vadd.f32 %v657, %v706
  %v708 = vand.u32 %v533, 4294901760
  %v709 = vsub.f32 %v533, %v708
  %710 = vmatmul.f32.gmra.mxu0 %v709
  %v711 = vpop.f32.mrf.mxu0
  %v712 = vadd.f32 %v661, %v711
  %v713 = vand.u32 %v536, 4294901760
  %v714 = vsub.f32 %v536, %v713
  %715 = vmatmul.f32.gmra.mxu0 %v714
  %v716 = vpop.f32.mrf.mxu0
  %v717 = vadd.f32 %v665, %v716
  %v718 = vand.u32 %v539, 4294901760
  %v719 = vsub.f32 %v539, %v718
  %720 = vmatmul.f32.gmra.mxu0 %v719
  %v721 = vpop.f32.mrf.mxu0
  %v722 = vadd.f32 %v669, %v721
  %723 = vdwg.mxu0
  %724 = vmatpush.msra.mxu0 0.0
  %725 = vmatpush.msra.mxu0 0.0
  %726 = vmatpush.msra.mxu0 0.0
  %727 = vmatpush.msra.mxu0 0.0
  %728 = vmatpush.msra.mxu0 0.0
  %729 = vmatpush.msra.mxu0 0.0
  %730 = vmatpush.msra.mxu0 0.0
  %731 = vmatpush.msra.mxu0 0.0
  %v732 = vand.u32 %v499, 4294901760
  %733 = vmatpush.msra.mxu0 %v732
  %v734 = vand.u32 %v498, 4294901760
  %735 = vmatpush.msra.mxu0 %v734
  %v736 = vand.u32 %v497, 4294901760
  %737 = vmatpush.msra.mxu0 %v736
  %v738 = vand.u32 %v496, 4294901760
  %739 = vmatpush.msra.mxu0 %v738
  %v740 = vand.u32 %v495, 4294901760
  %741 = vmatpush.msra.mxu0 %v740
  %v742 = vand.u32 %v494, 4294901760
  %743 = vmatpush.msra.mxu0 %v742
  %v744 = vand.u32 %v493, 4294901760
  %745 = vmatpush.msra.mxu0 %v744
  %v746 = vand.u32 %v492, 4294901760
  %747 = vmatpush.msra.mxu0 %v746
  %v748 = vand.u32 %v530, 4294901760
  %v749 = vsub.f32 %v530, %v748
  %v750 = vand.u32 %v749, 4294901760
  %751 = vmatmul.f32.gmra.mxu0 %v750
  %v752 = vpop.f32.mrf.mxu0
  %v753 = vadd.f32 %v707, %v752
  %v754 = vand.u32 %v533, 4294901760
  %v755 = vsub.f32 %v533, %v754
  %v756 = vand.u32 %v755, 4294901760
  %757 = vmatmul.f32.gmra.mxu0 %v756
  %v758 = vpop.f32.mrf.mxu0
  %v759 = vadd.f32 %v712, %v758
  %v760 = vand.u32 %v536, 4294901760
  %v761 = vsub.f32 %v536, %v760
  %v762 = vand.u32 %v761, 4294901760
  %763 = vmatmul.f32.gmra.mxu0 %v762
  %v764 = vpop.f32.mrf.mxu0
  %v765 = vadd.f32 %v717, %v764
  %v766 = vand.u32 %v539, 4294901760
  %v767 = vsub.f32 %v539, %v766
  %v768 = vand.u32 %v767, 4294901760
  %769 = vmatmul.f32.gmra.mxu0 %v768
  %v770 = vpop.f32.mrf.mxu0
  %v771 = vadd.f32 %v722, %v770
  %772 = vdwg.mxu0
  %773 = vmatpush.msra.mxu0 0.0
  %774 = vmatpush.msra.mxu0 0.0
  %775 = vmatpush.msra.mxu0 0.0
  %776 = vmatpush.msra.mxu0 0.0
  %777 = vmatpush.msra.mxu0 0.0
  %778 = vmatpush.msra.mxu0 0.0
  %779 = vmatpush.msra.mxu0 0.0
  %780 = vmatpush.msra.mxu0 0.0
  %v781 = vand.u32 %v499, 4294901760
  %v782 = vsub.f32 %v499, %v781
  %v783 = vand.u32 %v782, 4294901760
  %784 = vmatpush.msra.mxu0 %v783
  %v785 = vand.u32 %v498, 4294901760
  %v786 = vsub.f32 %v498, %v785
  %v787 = vand.u32 %v786, 4294901760
  %788 = vmatpush.msra.mxu0 %v787
  %v789 = vand.u32 %v497, 4294901760
  %v790 = vsub.f32 %v497, %v789
  %v791 = vand.u32 %v790, 4294901760
  %792 = vmatpush.msra.mxu0 %v791
  %v793 = vand.u32 %v496, 4294901760
  %v794 = vsub.f32 %v496, %v793
  %v795 = vand.u32 %v794, 4294901760
  %796 = vmatpush.msra.mxu0 %v795
  %v797 = vand.u32 %v495, 4294901760
  %v798 = vsub.f32 %v495, %v797
  %v799 = vand.u32 %v798, 4294901760
  %800 = vmatpush.msra.mxu0 %v799
  %v801 = vand.u32 %v494, 4294901760
  %v802 = vsub.f32 %v494, %v801
  %v803 = vand.u32 %v802, 4294901760
  %804 = vmatpush.msra.mxu0 %v803
  %v805 = vand.u32 %v493, 4294901760
  %v806 = vsub.f32 %v493, %v805
  %v807 = vand.u32 %v806, 4294901760
  %808 = vmatpush.msra.mxu0 %v807
  %v809 = vand.u32 %v492, 4294901760
  %v810 = vsub.f32 %v492, %v809
  %v811 = vand.u32 %v810, 4294901760
  %812 = vmatpush.msra.mxu0 %v811
  %v813 = vand.u32 %v530, 4294901760
  %814 = vmatmul.f32.gmra.mxu0 %v813
  %v815 = vpop.f32.mrf.mxu0
  %v816 = vadd.f32 %v753, %v815
  %v817 = vand.u32 %v533, 4294901760
  %818 = vmatmul.f32.gmra.mxu0 %v817
  %v819 = vpop.f32.mrf.mxu0
  %v820 = vadd.f32 %v759, %v819
  %v821 = vand.u32 %v536, 4294901760
  %822 = vmatmul.f32.gmra.mxu0 %v821
  %v823 = vpop.f32.mrf.mxu0
  %v824 = vadd.f32 %v765, %v823
  %v825 = vand.u32 %v539, 4294901760
  %826 = vmatmul.f32.gmra.mxu0 %v825
  %v827 = vpop.f32.mrf.mxu0
  %v828 = vadd.f32 %v771, %v827
  %829 = vdwg.mxu0
  %830 = vmatpush.msra.mxu0 0.0
  %831 = vmatpush.msra.mxu0 0.0
  %832 = vmatpush.msra.mxu0 0.0
  %833 = vmatpush.msra.mxu0 0.0
  %834 = vmatpush.msra.mxu0 0.0
  %835 = vmatpush.msra.mxu0 0.0
  %836 = vmatpush.msra.mxu0 0.0
  %837 = vmatpush.msra.mxu0 0.0
  %v838 = vand.u32 %v499, 4294901760
  %839 = vmatpush.msra.mxu0 %v838
  %v840 = vand.u32 %v498, 4294901760
  %841 = vmatpush.msra.mxu0 %v840
  %v842 = vand.u32 %v497, 4294901760
  %843 = vmatpush.msra.mxu0 %v842
  %v844 = vand.u32 %v496, 4294901760
  %845 = vmatpush.msra.mxu0 %v844
  %v846 = vand.u32 %v495, 4294901760
  %847 = vmatpush.msra.mxu0 %v846
  %v848 = vand.u32 %v494, 4294901760
  %849 = vmatpush.msra.mxu0 %v848
  %v850 = vand.u32 %v493, 4294901760
  %851 = vmatpush.msra.mxu0 %v850
  %v852 = vand.u32 %v492, 4294901760
  %853 = vmatpush.msra.mxu0 %v852
  %v854 = vand.u32 %v530, 4294901760
  %855 = vmatmul.f32.gmra.mxu0 %v854
  %v856 = vpop.f32.mrf.mxu0
  %v857 = vadd.f32 %v816, %v856
  %v858 = vand.u32 %v533, 4294901760
  %859 = vmatmul.f32.gmra.mxu0 %v858
  %v860 = vpop.f32.mrf.mxu0
  %v861 = vadd.f32 %v820, %v860
  %v862 = vand.u32 %v536, 4294901760
  %863 = vmatmul.f32.gmra.mxu0 %v862
  %v864 = vpop.f32.mrf.mxu0
  %v865 = vadd.f32 %v824, %v864
  %v866 = vand.u32 %v539, 4294901760
  %867 = vmatmul.f32.gmra.mxu0 %v866
  %v868 = vpop.f32.mrf.mxu0
  %v869 = vadd.f32 %v828, %v868
  %870 = vdwg.mxu0
  %v871 = vmax.f32 %v857, 0.0
  %v872 = vmax.f32 %v861, 0.0
  %v873 = vmax.f32 %v865, 0.0
  %v874 = vmax.f32 %v869, 0.0
  %v875 = vld [vmem:[%s5] sm:$0xff]
  %v876 = vld [vmem:[%s5 + $0x8] sm:$0xff]
  %v877 = vld [vmem:[%s6] sm:$0xff]
  %v878 = vld [vmem:[%s6 + $0x8] sm:$0xff]
  %880 = vset.pattern.permute.xlu0 0
  %881 = vperm.xlu0 %880, %v877
  %v882 = vpop.permute.xlu0 %881
  %885 = vset.pattern.permute.xlu0 0
  %886 = vperm.xlu0 %885, %v878
  %v887 = vpop.permute.xlu0 %886
  %vm889 = vcmask 261120
  %v891 = vsel %vm889, %v875, 0
  %v894 = vsel %vm889, %v876, 0
  %896 = vmatpush.msra.mxu0 0.0
  %897 = vmatpush.msra.mxu0 0.0
  %898 = vmatpush.msra.mxu0 0.0
  %899 = vmatpush.msra.mxu0 0.0
  %900 = vmatpush.msra.mxu0 0.0
  %901 = vmatpush.msra.mxu0 0.0
  %902 = vmatpush.msra.mxu0 0.0
  %903 = vmatpush.msra.mxu0 0.0
  %904 = vmatpush.msra.mxu0 0.0
  %905 = vmatpush.msra.mxu0 0.0
  %906 = vmatpush.msra.mxu0 0.0
  %907 = vmatpush.msra.mxu0 0.0
  %v908 = vand.u32 %v874, 4294901760
  %909 = vmatpush.msra.mxu0 %v908
  %v910 = vand.u32 %v873, 4294901760
  %911 = vmatpush.msra.mxu0 %v910
  %v912 = vand.u32 %v872, 4294901760
  %913 = vmatpush.msra.mxu0 %v912
  %v914 = vand.u32 %v871, 4294901760
  %915 = vmatpush.msra.mxu0 %v914
  %v916 = vand.u32 %v891, 4294901760
  %v917 = vsub.f32 %v891, %v916
  %v918 = vand.u32 %v917, 4294901760
  %v919 = vsub.f32 %v917, %v918
  %v920 = vand.u32 %v919, 4294901760
  %921 = vmatmul.f32.gmra.mxu0 %v920
  %v922 = vpop.f32.mrf.mxu0
  %v923 = vadd.f32 %v882, %v922
  %v924 = vand.u32 %v894, 4294901760
  %v925 = vsub.f32 %v894, %v924
  %v926 = vand.u32 %v925, 4294901760
  %v927 = vsub.f32 %v925, %v926
  %v928 = vand.u32 %v927, 4294901760
  %929 = vmatmul.f32.gmra.mxu0 %v928
  %v930 = vpop.f32.mrf.mxu0
  %v931 = vadd.f32 %v887, %v930
  %932 = vdwg.mxu0
  %933 = vmatpush.msra.mxu0 0.0
  %934 = vmatpush.msra.mxu0 0.0
  %935 = vmatpush.msra.mxu0 0.0
  %936 = vmatpush.msra.mxu0 0.0
  %937 = vmatpush.msra.mxu0 0.0
  %938 = vmatpush.msra.mxu0 0.0
  %939 = vmatpush.msra.mxu0 0.0
  %940 = vmatpush.msra.mxu0 0.0
  %941 = vmatpush.msra.mxu0 0.0
  %942 = vmatpush.msra.mxu0 0.0
  %943 = vmatpush.msra.mxu0 0.0
  %944 = vmatpush.msra.mxu0 0.0
  %v945 = vand.u32 %v874, 4294901760
  %v946 = vsub.f32 %v874, %v945
  %v947 = vand.u32 %v946, 4294901760
  %v948 = vsub.f32 %v946, %v947
  %v949 = vand.u32 %v948, 4294901760
  %950 = vmatpush.msra.mxu0 %v949
  %v951 = vand.u32 %v873, 4294901760
  %v952 = vsub.f32 %v873, %v951
  %v953 = vand.u32 %v952, 4294901760
  %v954 = vsub.f32 %v952, %v953
  %v955 = vand.u32 %v954, 4294901760
  %956 = vmatpush.msra.mxu0 %v955
  %v957 = vand.u32 %v872, 4294901760
  %v958 = vsub.f32 %v872, %v957
  %v959 = vand.u32 %v958, 4294901760
  %v960 = vsub.f32 %v958, %v959
  %v961 = vand.u32 %v960, 4294901760
  %962 = vmatpush.msra.mxu0 %v961
  %v963 = vand.u32 %v871, 4294901760
  %v964 = vsub.f32 %v871, %v963
  %v965 = vand.u32 %v964, 4294901760
  %v966 = vsub.f32 %v964, %v965
  %v967 = vand.u32 %v966, 4294901760
  %968 = vmatpush.msra.mxu0 %v967
  %v969 = vand.u32 %v891, 4294901760
  %970 = vmatmul.f32.gmra.mxu0 %v969
  %v971 = vpop.f32.mrf.mxu0
  %v972 = vadd.f32 %v923, %v971
  %v973 = vand.u32 %v894, 4294901760
  %974 = vmatmul.f32.gmra.mxu0 %v973
  %v975 = vpop.f32.mrf.mxu0
  %v976 = vadd.f32 %v931, %v975
  %977 = vdwg.mxu0
  %978 = vmatpush.msra.mxu0 0.0
  %979 = vmatpush.msra.mxu0 0.0
  %980 = vmatpush.msra.mxu0 0.0
  %981 = vmatpush.msra.mxu0 0.0
  %982 = vmatpush.msra.mxu0 0.0
  %983 = vmatpush.msra.mxu0 0.0
  %984 = vmatpush.msra.mxu0 0.0
  %985 = vmatpush.msra.mxu0 0.0
  %986 = vmatpush.msra.mxu0 0.0
  %987 = vmatpush.msra.mxu0 0.0
  %988 = vmatpush.msra.mxu0 0.0
  %989 = vmatpush.msra.mxu0 0.0
  %v990 = vand.u32 %v874, 4294901760
  %v991 = vsub.f32 %v874, %v990
  %992 = vmatpush.msra.mxu0 %v991
  %v993 = vand.u32 %v873, 4294901760
  %v994 = vsub.f32 %v873, %v993
  %995 = vmatpush.msra.mxu0 %v994
  %v996 = vand.u32 %v872, 4294901760
  %v997 = vsub.f32 %v872, %v996
  %998 = vmatpush.msra.mxu0 %v997
  %v999 = vand.u32 %v871, 4294901760
  %v1000 = vsub.f32 %v871, %v999
  %1001 = vmatpush.msra.mxu0 %v1000
  %v1002 = vand.u32 %v891, 4294901760
  %v1003 = vsub.f32 %v891, %v1002
  %1004 = vmatmul.f32.gmra.mxu0 %v1003
  %v1005 = vpop.f32.mrf.mxu0
  %v1006 = vadd.f32 %v972, %v1005
  %v1007 = vand.u32 %v894, 4294901760
  %v1008 = vsub.f32 %v894, %v1007
  %1009 = vmatmul.f32.gmra.mxu0 %v1008
  %v1010 = vpop.f32.mrf.mxu0
  %v1011 = vadd.f32 %v976, %v1010
  %1012 = vdwg.mxu0
  %1013 = vmatpush.msra.mxu0 0.0
  %1014 = vmatpush.msra.mxu0 0.0
  %1015 = vmatpush.msra.mxu0 0.0
  %1016 = vmatpush.msra.mxu0 0.0
  %1017 = vmatpush.msra.mxu0 0.0
  %1018 = vmatpush.msra.mxu0 0.0
  %1019 = vmatpush.msra.mxu0 0.0
  %1020 = vmatpush.msra.mxu0 0.0
  %1021 = vmatpush.msra.mxu0 0.0
  %1022 = vmatpush.msra.mxu0 0.0
  %1023 = vmatpush.msra.mxu0 0.0
  %1024 = vmatpush.msra.mxu0 0.0
  %v1025 = vand.u32 %v874, 4294901760
  %1026 = vmatpush.msra.mxu0 %v1025
  %v1027 = vand.u32 %v873, 4294901760
  %1028 = vmatpush.msra.mxu0 %v1027
  %v1029 = vand.u32 %v872, 4294901760
  %1030 = vmatpush.msra.mxu0 %v1029
  %v1031 = vand.u32 %v871, 4294901760
  %1032 = vmatpush.msra.mxu0 %v1031
  %v1033 = vand.u32 %v891, 4294901760
  %v1034 = vsub.f32 %v891, %v1033
  %v1035 = vand.u32 %v1034, 4294901760
  %1036 = vmatmul.f32.gmra.mxu0 %v1035
  %v1037 = vpop.f32.mrf.mxu0
  %v1038 = vadd.f32 %v1006, %v1037
  %v1039 = vand.u32 %v894, 4294901760
  %v1040 = vsub.f32 %v894, %v1039
  %v1041 = vand.u32 %v1040, 4294901760
  %1042 = vmatmul.f32.gmra.mxu0 %v1041
  %v1043 = vpop.f32.mrf.mxu0
  %v1044 = vadd.f32 %v1011, %v1043
  %1045 = vdwg.mxu0
  %1046 = vmatpush.msra.mxu0 0.0
  %1047 = vmatpush.msra.mxu0 0.0
  %1048 = vmatpush.msra.mxu0 0.0
  %1049 = vmatpush.msra.mxu0 0.0
  %1050 = vmatpush.msra.mxu0 0.0
  %1051 = vmatpush.msra.mxu0 0.0
  %1052 = vmatpush.msra.mxu0 0.0
  %1053 = vmatpush.msra.mxu0 0.0
  %1054 = vmatpush.msra.mxu0 0.0
  %1055 = vmatpush.msra.mxu0 0.0
  %1056 = vmatpush.msra.mxu0 0.0
  %1057 = vmatpush.msra.mxu0 0.0
  %v1058 = vand.u32 %v874, 4294901760
  %v1059 = vsub.f32 %v874, %v1058
  %v1060 = vand.u32 %v1059, 4294901760
  %1061 = vmatpush.msra.mxu0 %v1060
  %v1062 = vand.u32 %v873, 4294901760
  %v1063 = vsub.f32 %v873, %v1062
  %v1064 = vand.u32 %v1063, 4294901760
  %1065 = vmatpush.msra.mxu0 %v1064
  %v1066 = vand.u32 %v872, 4294901760
  %v1067 = vsub.f32 %v872, %v1066
  %v1068 = vand.u32 %v1067, 4294901760
  %1069 = vmatpush.msra.mxu0 %v1068
  %v1070 = vand.u32 %v871, 4294901760
  %v1071 = vsub.f32 %v871, %v1070
  %v1072 = vand.u32 %v1071, 4294901760
  %1073 = vmatpush.msra.mxu0 %v1072
  %v1074 = vand.u32 %v891, 4294901760
  %1075 = vmatmul.f32.gmra.mxu0 %v1074
  %v1076 = vpop.f32.mrf.mxu0
  %v1077 = vadd.f32 %v1038, %v1076
  %v1078 = vand.u32 %v894, 4294901760
  %1079 = vmatmul.f32.gmra.mxu0 %v1078
  %v1080 = vpop.f32.mrf.mxu0
  %v1081 = vadd.f32 %v1044, %v1080
  %1082 = vdwg.mxu0
  %1083 = vmatpush.msra.mxu0 0.0
  %1084 = vmatpush.msra.mxu0 0.0
  %1085 = vmatpush.msra.mxu0 0.0
  %1086 = vmatpush.msra.mxu0 0.0
  %1087 = vmatpush.msra.mxu0 0.0
  %1088 = vmatpush.msra.mxu0 0.0
  %1089 = vmatpush.msra.mxu0 0.0
  %1090 = vmatpush.msra.mxu0 0.0
  %1091 = vmatpush.msra.mxu0 0.0
  %1092 = vmatpush.msra.mxu0 0.0
  %1093 = vmatpush.msra.mxu0 0.0
  %1094 = vmatpush.msra.mxu0 0.0
  %v1095 = vand.u32 %v874, 4294901760
  %1096 = vmatpush.msra.mxu0 %v1095
  %v1097 = vand.u32 %v873, 4294901760
  %1098 = vmatpush.msra.mxu0 %v1097
  %v1099 = vand.u32 %v872, 4294901760
  %1100 = vmatpush.msra.mxu0 %v1099
  %v1101 = vand.u32 %v871, 4294901760
  %1102 = vmatpush.msra.mxu0 %v1101
  %v1103 = vand.u32 %v891, 4294901760
  %1104 = vmatmul.f32.gmra.mxu0 %v1103
  %v1105 = vpop.f32.mrf.mxu0
  %v1106 = vadd.f32 %v1077, %v1105
  %v1107 = vand.u32 %v894, 4294901760
  %1108 = vmatmul.f32.gmra.mxu0 %v1107
  %v1109 = vpop.f32.mrf.mxu0
  %v1110 = vadd.f32 %v1081, %v1109
  %1111 = vdwg.mxu0
  %v1112 = vld [vmem:[%s7] sm:$0xff]
  %v1113 = vld [vmem:[%s7 + $0x8] sm:$0xff]
  %v1114 = vld [vmem:[%s7 + $0x10] sm:$0xff]
  %v1115 = vld [vmem:[%s7 + $0x18] sm:$0xff]
  %v1116 = vld [vmem:[%s8] sm:$0xff]
  %v1117 = vld [vmem:[%s8 + $0x8] sm:$0xff]
  %v1118 = vld [vmem:[%s8 + $0x10] sm:$0xff]
  %v1119 = vld [vmem:[%s8 + $0x18] sm:$0xff]
  %1121 = vset.pattern.permute.xlu0 0
  %1122 = vperm.xlu0 %1121, %v1116
  %v1123 = vpop.permute.xlu0 %1122
  %1126 = vset.pattern.permute.xlu0 0
  %1127 = vperm.xlu0 %1126, %v1117
  %v1128 = vpop.permute.xlu0 %1127
  %1131 = vset.pattern.permute.xlu0 0
  %1132 = vperm.xlu0 %1131, %v1118
  %v1133 = vpop.permute.xlu0 %1132
  %1136 = vset.pattern.permute.xlu0 0
  %1137 = vperm.xlu0 %1136, %v1119
  %v1138 = vpop.permute.xlu0 %1137
  %vm1140 = vcmask 130048
  %v1142 = vsel %vm1140, %v1112, 0
  %v1145 = vsel %vm1140, %v1113, 0
  %v1148 = vsel %vm1140, %v1114, 0
  %v1151 = vsel %vm1140, %v1115, 0
  %1153 = vmatpush.msra.mxu0 0.0
  %1154 = vmatpush.msra.mxu0 0.0
  %1155 = vmatpush.msra.mxu0 0.0
  %1156 = vmatpush.msra.mxu0 0.0
  %1157 = vmatpush.msra.mxu0 0.0
  %1158 = vmatpush.msra.mxu0 0.0
  %1159 = vmatpush.msra.mxu0 0.0
  %1160 = vmatpush.msra.mxu0 0.0
  %1161 = vmatpush.msra.mxu0 0.0
  %1162 = vmatpush.msra.mxu0 0.0
  %1163 = vmatpush.msra.mxu0 0.0
  %1164 = vmatpush.msra.mxu0 0.0
  %1165 = vmatpush.msra.mxu0 0.0
  %1166 = vmatpush.msra.mxu0 0.0
  %v1167 = vand.u32 %v1110, 4294901760
  %1168 = vmatpush.msra.mxu0 %v1167
  %v1169 = vand.u32 %v1106, 4294901760
  %1170 = vmatpush.msra.mxu0 %v1169
  %v1171 = vand.u32 %v1142, 4294901760
  %v1172 = vsub.f32 %v1142, %v1171
  %v1173 = vand.u32 %v1172, 4294901760
  %v1174 = vsub.f32 %v1172, %v1173
  %v1175 = vand.u32 %v1174, 4294901760
  %1176 = vmatmul.f32.gmra.mxu0 %v1175
  %v1177 = vpop.f32.mrf.mxu0
  %v1178 = vadd.f32 %v1123, %v1177
  %v1179 = vand.u32 %v1145, 4294901760
  %v1180 = vsub.f32 %v1145, %v1179
  %v1181 = vand.u32 %v1180, 4294901760
  %v1182 = vsub.f32 %v1180, %v1181
  %v1183 = vand.u32 %v1182, 4294901760
  %1184 = vmatmul.f32.gmra.mxu0 %v1183
  %v1185 = vpop.f32.mrf.mxu0
  %v1186 = vadd.f32 %v1128, %v1185
  %v1187 = vand.u32 %v1148, 4294901760
  %v1188 = vsub.f32 %v1148, %v1187
  %v1189 = vand.u32 %v1188, 4294901760
  %v1190 = vsub.f32 %v1188, %v1189
  %v1191 = vand.u32 %v1190, 4294901760
  %1192 = vmatmul.f32.gmra.mxu0 %v1191
  %v1193 = vpop.f32.mrf.mxu0
  %v1194 = vadd.f32 %v1133, %v1193
  %v1195 = vand.u32 %v1151, 4294901760
  %v1196 = vsub.f32 %v1151, %v1195
  %v1197 = vand.u32 %v1196, 4294901760
  %v1198 = vsub.f32 %v1196, %v1197
  %v1199 = vand.u32 %v1198, 4294901760
  %1200 = vmatmul.f32.gmra.mxu0 %v1199
  %v1201 = vpop.f32.mrf.mxu0
  %v1202 = vadd.f32 %v1138, %v1201
  %1203 = vdwg.mxu0
  %1204 = vmatpush.msra.mxu0 0.0
  %1205 = vmatpush.msra.mxu0 0.0
  %1206 = vmatpush.msra.mxu0 0.0
  %1207 = vmatpush.msra.mxu0 0.0
  %1208 = vmatpush.msra.mxu0 0.0
  %1209 = vmatpush.msra.mxu0 0.0
  %1210 = vmatpush.msra.mxu0 0.0
  %1211 = vmatpush.msra.mxu0 0.0
  %1212 = vmatpush.msra.mxu0 0.0
  %1213 = vmatpush.msra.mxu0 0.0
  %1214 = vmatpush.msra.mxu0 0.0
  %1215 = vmatpush.msra.mxu0 0.0
  %1216 = vmatpush.msra.mxu0 0.0
  %1217 = vmatpush.msra.mxu0 0.0
  %v1218 = vand.u32 %v1110, 4294901760
  %v1219 = vsub.f32 %v1110, %v1218
  %v1220 = vand.u32 %v1219, 4294901760
  %v1221 = vsub.f32 %v1219, %v1220
  %v1222 = vand.u32 %v1221, 4294901760
  %1223 = vmatpush.msra.mxu0 %v1222
  %v1224 = vand.u32 %v1106, 4294901760
  %v1225 = vsub.f32 %v1106, %v1224
  %v1226 = vand.u32 %v1225, 4294901760
  %v1227 = vsub.f32 %v1225, %v1226
  %v1228 = vand.u32 %v1227, 4294901760
  %1229 = vmatpush.msra.mxu0 %v1228
  %v1230 = vand.u32 %v1142, 4294901760
  %1231 = vmatmul.f32.gmra.mxu0 %v1230
  %v1232 = vpop.f32.mrf.mxu0
  %v1233 = vadd.f32 %v1178, %v1232
  %v1234 = vand.u32 %v1145, 4294901760
  %1235 = vmatmul.f32.gmra.mxu0 %v1234
  %v1236 = vpop.f32.mrf.mxu0
  %v1237 = vadd.f32 %v1186, %v1236
  %v1238 = vand.u32 %v1148, 4294901760
  %1239 = vmatmul.f32.gmra.mxu0 %v1238
  %v1240 = vpop.f32.mrf.mxu0
  %v1241 = vadd.f32 %v1194, %v1240
  %v1242 = vand.u32 %v1151, 4294901760
  %1243 = vmatmul.f32.gmra.mxu0 %v1242
  %v1244 = vpop.f32.mrf.mxu0
  %v1245 = vadd.f32 %v1202, %v1244
  %1246 = vdwg.mxu0
  %1247 = vmatpush.msra.mxu0 0.0
  %1248 = vmatpush.msra.mxu0 0.0
  %1249 = vmatpush.msra.mxu0 0.0
  %1250 = vmatpush.msra.mxu0 0.0
  %1251 = vmatpush.msra.mxu0 0.0
  %1252 = vmatpush.msra.mxu0 0.0
  %1253 = vmatpush.msra.mxu0 0.0
  %1254 = vmatpush.msra.mxu0 0.0
  %1255 = vmatpush.msra.mxu0 0.0
  %1256 = vmatpush.msra.mxu0 0.0
  %1257 = vmatpush.msra.mxu0 0.0
  %1258 = vmatpush.msra.mxu0 0.0
  %1259 = vmatpush.msra.mxu0 0.0
  %1260 = vmatpush.msra.mxu0 0.0
  %v1261 = vand.u32 %v1110, 4294901760
  %v1262 = vsub.f32 %v1110, %v1261
  %1263 = vmatpush.msra.mxu0 %v1262
  %v1264 = vand.u32 %v1106, 4294901760
  %v1265 = vsub.f32 %v1106, %v1264
  %1266 = vmatpush.msra.mxu0 %v1265
  %v1267 = vand.u32 %v1142, 4294901760
  %v1268 = vsub.f32 %v1142, %v1267
  %1269 = vmatmul.f32.gmra.mxu0 %v1268
  %v1270 = vpop.f32.mrf.mxu0
  %v1271 = vadd.f32 %v1233, %v1270
  %v1272 = vand.u32 %v1145, 4294901760
  %v1273 = vsub.f32 %v1145, %v1272
  %1274 = vmatmul.f32.gmra.mxu0 %v1273
  %v1275 = vpop.f32.mrf.mxu0
  %v1276 = vadd.f32 %v1237, %v1275
  %v1277 = vand.u32 %v1148, 4294901760
  %v1278 = vsub.f32 %v1148, %v1277
  %1279 = vmatmul.f32.gmra.mxu0 %v1278
  %v1280 = vpop.f32.mrf.mxu0
  %v1281 = vadd.f32 %v1241, %v1280
  %v1282 = vand.u32 %v1151, 4294901760
  %v1283 = vsub.f32 %v1151, %v1282
  %1284 = vmatmul.f32.gmra.mxu0 %v1283
  %v1285 = vpop.f32.mrf.mxu0
  %v1286 = vadd.f32 %v1245, %v1285
  %1287 = vdwg.mxu0
  %1288 = vmatpush.msra.mxu0 0.0
  %1289 = vmatpush.msra.mxu0 0.0
  %1290 = vmatpush.msra.mxu0 0.0
  %1291 = vmatpush.msra.mxu0 0.0
  %1292 = vmatpush.msra.mxu0 0.0
  %1293 = vmatpush.msra.mxu0 0.0
  %1294 = vmatpush.msra.mxu0 0.0
  %1295 = vmatpush.msra.mxu0 0.0
  %1296 = vmatpush.msra.mxu0 0.0
  %1297 = vmatpush.msra.mxu0 0.0
  %1298 = vmatpush.msra.mxu0 0.0
  %1299 = vmatpush.msra.mxu0 0.0
  %1300 = vmatpush.msra.mxu0 0.0
  %1301 = vmatpush.msra.mxu0 0.0
  %v1302 = vand.u32 %v1110, 4294901760
  %1303 = vmatpush.msra.mxu0 %v1302
  %v1304 = vand.u32 %v1106, 4294901760
  %1305 = vmatpush.msra.mxu0 %v1304
  %v1306 = vand.u32 %v1142, 4294901760
  %v1307 = vsub.f32 %v1142, %v1306
  %v1308 = vand.u32 %v1307, 4294901760
  %1309 = vmatmul.f32.gmra.mxu0 %v1308
  %v1310 = vpop.f32.mrf.mxu0
  %v1311 = vadd.f32 %v1271, %v1310
  %v1312 = vand.u32 %v1145, 4294901760
  %v1313 = vsub.f32 %v1145, %v1312
  %v1314 = vand.u32 %v1313, 4294901760
  %1315 = vmatmul.f32.gmra.mxu0 %v1314
  %v1316 = vpop.f32.mrf.mxu0
  %v1317 = vadd.f32 %v1276, %v1316
  %v1318 = vand.u32 %v1148, 4294901760
  %v1319 = vsub.f32 %v1148, %v1318
  %v1320 = vand.u32 %v1319, 4294901760
  %1321 = vmatmul.f32.gmra.mxu0 %v1320
  %v1322 = vpop.f32.mrf.mxu0
  %v1323 = vadd.f32 %v1281, %v1322
  %v1324 = vand.u32 %v1151, 4294901760
  %v1325 = vsub.f32 %v1151, %v1324
  %v1326 = vand.u32 %v1325, 4294901760
  %1327 = vmatmul.f32.gmra.mxu0 %v1326
  %v1328 = vpop.f32.mrf.mxu0
  %v1329 = vadd.f32 %v1286, %v1328
  %1330 = vdwg.mxu0
  %1331 = vmatpush.msra.mxu0 0.0
  %1332 = vmatpush.msra.mxu0 0.0
  %1333 = vmatpush.msra.mxu0 0.0
  %1334 = vmatpush.msra.mxu0 0.0
  %1335 = vmatpush.msra.mxu0 0.0
  %1336 = vmatpush.msra.mxu0 0.0
  %1337 = vmatpush.msra.mxu0 0.0
  %1338 = vmatpush.msra.mxu0 0.0
  %1339 = vmatpush.msra.mxu0 0.0
  %1340 = vmatpush.msra.mxu0 0.0
  %1341 = vmatpush.msra.mxu0 0.0
  %1342 = vmatpush.msra.mxu0 0.0
  %1343 = vmatpush.msra.mxu0 0.0
  %1344 = vmatpush.msra.mxu0 0.0
  %v1345 = vand.u32 %v1110, 4294901760
  %v1346 = vsub.f32 %v1110, %v1345
  %v1347 = vand.u32 %v1346, 4294901760
  %1348 = vmatpush.msra.mxu0 %v1347
  %v1349 = vand.u32 %v1106, 4294901760
  %v1350 = vsub.f32 %v1106, %v1349
  %v1351 = vand.u32 %v1350, 4294901760
  %1352 = vmatpush.msra.mxu0 %v1351
  %v1353 = vand.u32 %v1142, 4294901760
  %1354 = vmatmul.f32.gmra.mxu0 %v1353
  %v1355 = vpop.f32.mrf.mxu0
  %v1356 = vadd.f32 %v1311, %v1355
  %v1357 = vand.u32 %v1145, 4294901760
  %1358 = vmatmul.f32.gmra.mxu0 %v1357
  %v1359 = vpop.f32.mrf.mxu0
  %v1360 = vadd.f32 %v1317, %v1359
  %v1361 = vand.u32 %v1148, 4294901760
  %1362 = vmatmul.f32.gmra.mxu0 %v1361
  %v1363 = vpop.f32.mrf.mxu0
  %v1364 = vadd.f32 %v1323, %v1363
  %v1365 = vand.u32 %v1151, 4294901760
  %1366 = vmatmul.f32.gmra.mxu0 %v1365
  %v1367 = vpop.f32.mrf.mxu0
  %v1368 = vadd.f32 %v1329, %v1367
  %1369 = vdwg.mxu0
  %1370 = vmatpush.msra.mxu0 0.0
  %1371 = vmatpush.msra.mxu0 0.0
  %1372 = vmatpush.msra.mxu0 0.0
  %1373 = vmatpush.msra.mxu0 0.0
  %1374 = vmatpush.msra.mxu0 0.0
  %1375 = vmatpush.msra.mxu0 0.0
  %1376 = vmatpush.msra.mxu0 0.0
  %1377 = vmatpush.msra.mxu0 0.0
  %1378 = vmatpush.msra.mxu0 0.0
  %1379 = vmatpush.msra.mxu0 0.0
  %1380 = vmatpush.msra.mxu0 0.0
  %1381 = vmatpush.msra.mxu0 0.0
  %1382 = vmatpush.msra.mxu0 0.0
  %1383 = vmatpush.msra.mxu0 0.0
  %v1384 = vand.u32 %v1110, 4294901760
  %1385 = vmatpush.msra.mxu0 %v1384
  %v1386 = vand.u32 %v1106, 4294901760
  %1387 = vmatpush.msra.mxu0 %v1386
  %v1388 = vand.u32 %v1142, 4294901760
  %1389 = vmatmul.f32.gmra.mxu0 %v1388
  %v1390 = vpop.f32.mrf.mxu0
  %v1391 = vadd.f32 %v1356, %v1390
  %v1392 = vand.u32 %v1145, 4294901760
  %1393 = vmatmul.f32.gmra.mxu0 %v1392
  %v1394 = vpop.f32.mrf.mxu0
  %v1395 = vadd.f32 %v1360, %v1394
  %v1396 = vand.u32 %v1148, 4294901760
  %1397 = vmatmul.f32.gmra.mxu0 %v1396
  %v1398 = vpop.f32.mrf.mxu0
  %v1399 = vadd.f32 %v1364, %v1398
  %v1400 = vand.u32 %v1151, 4294901760
  %1401 = vmatmul.f32.gmra.mxu0 %v1400
  %v1402 = vpop.f32.mrf.mxu0
  %v1403 = vadd.f32 %v1368, %v1402
  %1404 = vdwg.mxu0
  %v1405 = vmax.f32 %v1391, 0.0
  %v1406 = vmax.f32 %v1395, 0.0
  %v1407 = vmax.f32 %v1399, 0.0
  %v1408 = vmax.f32 %v1403, 0.0
  %v1409 = vld [vmem:[%s9] sm:$0xff]
  %v1410 = vld [vmem:[%s9 + $0x8] sm:$0xff]
  %v1411 = vld [vmem:[%s9 + $0x10] sm:$0xff]
  %v1412 = vld [vmem:[%s9 + $0x18] sm:$0xff]
  %v1413 = vld [vmem:[%s9 + $0x20] sm:$0xff]
  %v1414 = vld [vmem:[%s9 + $0x28] sm:$0xff]
  %v1415 = vld [vmem:[%s9 + $0x30] sm:$0xff]
  %v1416 = vld [vmem:[%s9 + $0x38] sm:$0xff]
  %v1417 = vld [vmem:[%s10] sm:$0xff]
  %v1418 = vld [vmem:[%s10 + $0x8] sm:$0xff]
  %v1419 = vld [vmem:[%s10 + $0x10] sm:$0xff]
  %v1420 = vld [vmem:[%s10 + $0x18] sm:$0xff]
  %v1421 = vld [vmem:[%s10 + $0x20] sm:$0xff]
  %v1422 = vld [vmem:[%s10 + $0x28] sm:$0xff]
  %v1423 = vld [vmem:[%s10 + $0x30] sm:$0xff]
  %v1424 = vld [vmem:[%s10 + $0x38] sm:$0xff]
  %1426 = vset.pattern.permute.xlu0 0
  %1427 = vperm.xlu0 %1426, %v1417
  %v1428 = vpop.permute.xlu0 %1427
  %1431 = vset.pattern.permute.xlu0 0
  %1432 = vperm.xlu0 %1431, %v1418
  %v1433 = vpop.permute.xlu0 %1432
  %1436 = vset.pattern.permute.xlu0 0
  %1437 = vperm.xlu0 %1436, %v1419
  %v1438 = vpop.permute.xlu0 %1437
  %1441 = vset.pattern.permute.xlu0 0
  %1442 = vperm.xlu0 %1441, %v1420
  %v1443 = vpop.permute.xlu0 %1442
  %1446 = vset.pattern.permute.xlu0 0
  %1447 = vperm.xlu0 %1446, %v1421
  %v1448 = vpop.permute.xlu0 %1447
  %1451 = vset.pattern.permute.xlu0 0
  %1452 = vperm.xlu0 %1451, %v1422
  %v1453 = vpop.permute.xlu0 %1452
  %1456 = vset.pattern.permute.xlu0 0
  %1457 = vperm.xlu0 %1456, %v1423
  %v1458 = vpop.permute.xlu0 %1457
  %1461 = vset.pattern.permute.xlu0 0
  %1462 = vperm.xlu0 %1461, %v1424
  %v1463 = vpop.permute.xlu0 %1462
  %v1466 = vsel %vm889, %v1409, 0
  %v1469 = vsel %vm889, %v1410, 0
  %v1472 = vsel %vm889, %v1411, 0
  %v1475 = vsel %vm889, %v1412, 0
  %v1478 = vsel %vm889, %v1413, 0
  %v1481 = vsel %vm889, %v1414, 0
  %v1484 = vsel %vm889, %v1415, 0
  %v1487 = vsel %vm889, %v1416, 0
  %1489 = vmatpush.msra.mxu0 0.0
  %1490 = vmatpush.msra.mxu0 0.0
  %1491 = vmatpush.msra.mxu0 0.0
  %1492 = vmatpush.msra.mxu0 0.0
  %1493 = vmatpush.msra.mxu0 0.0
  %1494 = vmatpush.msra.mxu0 0.0
  %1495 = vmatpush.msra.mxu0 0.0
  %1496 = vmatpush.msra.mxu0 0.0
  %1497 = vmatpush.msra.mxu0 0.0
  %1498 = vmatpush.msra.mxu0 0.0
  %1499 = vmatpush.msra.mxu0 0.0
  %1500 = vmatpush.msra.mxu0 0.0
  %v1501 = vand.u32 %v1408, 4294901760
  %1502 = vmatpush.msra.mxu0 %v1501
  %v1503 = vand.u32 %v1407, 4294901760
  %1504 = vmatpush.msra.mxu0 %v1503
  %v1505 = vand.u32 %v1406, 4294901760
  %1506 = vmatpush.msra.mxu0 %v1505
  %v1507 = vand.u32 %v1405, 4294901760
  %1508 = vmatpush.msra.mxu0 %v1507
  %v1509 = vand.u32 %v1466, 4294901760
  %v1510 = vsub.f32 %v1466, %v1509
  %v1511 = vand.u32 %v1510, 4294901760
  %v1512 = vsub.f32 %v1510, %v1511
  %v1513 = vand.u32 %v1512, 4294901760
  %1514 = vmatmul.f32.gmra.mxu0 %v1513
  %v1515 = vpop.f32.mrf.mxu0
  %v1516 = vadd.f32 %v1428, %v1515
  %v1517 = vand.u32 %v1469, 4294901760
  %v1518 = vsub.f32 %v1469, %v1517
  %v1519 = vand.u32 %v1518, 4294901760
  %v1520 = vsub.f32 %v1518, %v1519
  %v1521 = vand.u32 %v1520, 4294901760
  %1522 = vmatmul.f32.gmra.mxu0 %v1521
  %v1523 = vpop.f32.mrf.mxu0
  %v1524 = vadd.f32 %v1433, %v1523
  %v1525 = vand.u32 %v1472, 4294901760
  %v1526 = vsub.f32 %v1472, %v1525
  %v1527 = vand.u32 %v1526, 4294901760
  %v1528 = vsub.f32 %v1526, %v1527
  %v1529 = vand.u32 %v1528, 4294901760
  %1530 = vmatmul.f32.gmra.mxu0 %v1529
  %v1531 = vpop.f32.mrf.mxu0
  %v1532 = vadd.f32 %v1438, %v1531
  %v1533 = vand.u32 %v1475, 4294901760
  %v1534 = vsub.f32 %v1475, %v1533
  %v1535 = vand.u32 %v1534, 4294901760
  %v1536 = vsub.f32 %v1534, %v1535
  %v1537 = vand.u32 %v1536, 4294901760
  %1538 = vmatmul.f32.gmra.mxu0 %v1537
  %v1539 = vpop.f32.mrf.mxu0
  %v1540 = vadd.f32 %v1443, %v1539
  %v1541 = vand.u32 %v1478, 4294901760
  %v1542 = vsub.f32 %v1478, %v1541
  %v1543 = vand.u32 %v1542, 4294901760
  %v1544 = vsub.f32 %v1542, %v1543
  %v1545 = vand.u32 %v1544, 4294901760
  %1546 = vmatmul.f32.gmra.mxu0 %v1545
  %v1547 = vpop.f32.mrf.mxu0
  %v1548 = vadd.f32 %v1448, %v1547
  %v1549 = vand.u32 %v1481, 4294901760
  %v1550 = vsub.f32 %v1481, %v1549
  %v1551 = vand.u32 %v1550, 4294901760
  %v1552 = vsub.f32 %v1550, %v1551
  %v1553 = vand.u32 %v1552, 4294901760
  %1554 = vmatmul.f32.gmra.mxu0 %v1553
  %v1555 = vpop.f32.mrf.mxu0
  %v1556 = vadd.f32 %v1453, %v1555
  %v1557 = vand.u32 %v1484, 4294901760
  %v1558 = vsub.f32 %v1484, %v1557
  %v1559 = vand.u32 %v1558, 4294901760
  %v1560 = vsub.f32 %v1558, %v1559
  %v1561 = vand.u32 %v1560, 4294901760
  %1562 = vmatmul.f32.gmra.mxu0 %v1561
  %v1563 = vpop.f32.mrf.mxu0
  %v1564 = vadd.f32 %v1458, %v1563
  %v1565 = vand.u32 %v1487, 4294901760
  %v1566 = vsub.f32 %v1487, %v1565
  %v1567 = vand.u32 %v1566, 4294901760
  %v1568 = vsub.f32 %v1566, %v1567
  %v1569 = vand.u32 %v1568, 4294901760
  %1570 = vmatmul.f32.gmra.mxu0 %v1569
  %v1571 = vpop.f32.mrf.mxu0
  %v1572 = vadd.f32 %v1463, %v1571
  %1573 = vdwg.mxu0
  %1574 = vmatpush.msra.mxu0 0.0
  %1575 = vmatpush.msra.mxu0 0.0
  %1576 = vmatpush.msra.mxu0 0.0
  %1577 = vmatpush.msra.mxu0 0.0
  %1578 = vmatpush.msra.mxu0 0.0
  %1579 = vmatpush.msra.mxu0 0.0
  %1580 = vmatpush.msra.mxu0 0.0
  %1581 = vmatpush.msra.mxu0 0.0
  %1582 = vmatpush.msra.mxu0 0.0
  %1583 = vmatpush.msra.mxu0 0.0
  %1584 = vmatpush.msra.mxu0 0.0
  %1585 = vmatpush.msra.mxu0 0.0
  %v1586 = vand.u32 %v1408, 4294901760
  %v1587 = vsub.f32 %v1408, %v1586
  %v1588 = vand.u32 %v1587, 4294901760
  %v1589 = vsub.f32 %v1587, %v1588
  %v1590 = vand.u32 %v1589, 4294901760
  %1591 = vmatpush.msra.mxu0 %v1590
  %v1592 = vand.u32 %v1407, 4294901760
  %v1593 = vsub.f32 %v1407, %v1592
  %v1594 = vand.u32 %v1593, 4294901760
  %v1595 = vsub.f32 %v1593, %v1594
  %v1596 = vand.u32 %v1595, 4294901760
  %1597 = vmatpush.msra.mxu0 %v1596
  %v1598 = vand.u32 %v1406, 4294901760
  %v1599 = vsub.f32 %v1406, %v1598
  %v1600 = vand.u32 %v1599, 4294901760
  %v1601 = vsub.f32 %v1599, %v1600
  %v1602 = vand.u32 %v1601, 4294901760
  %1603 = vmatpush.msra.mxu0 %v1602
  %v1604 = vand.u32 %v1405, 4294901760
  %v1605 = vsub.f32 %v1405, %v1604
  %v1606 = vand.u32 %v1605, 4294901760
  %v1607 = vsub.f32 %v1605, %v1606
  %v1608 = vand.u32 %v1607, 4294901760
  %1609 = vmatpush.msra.mxu0 %v1608
  %v1610 = vand.u32 %v1466, 4294901760
  %1611 = vmatmul.f32.gmra.mxu0 %v1610
  %v1612 = vpop.f32.mrf.mxu0
  %v1613 = vadd.f32 %v1516, %v1612
  %v1614 = vand.u32 %v1469, 4294901760
  %1615 = vmatmul.f32.gmra.mxu0 %v1614
  %v1616 = vpop.f32.mrf.mxu0
  %v1617 = vadd.f32 %v1524, %v1616
  %v1618 = vand.u32 %v1472, 4294901760
  %1619 = vmatmul.f32.gmra.mxu0 %v1618
  %v1620 = vpop.f32.mrf.mxu0
  %v1621 = vadd.f32 %v1532, %v1620
  %v1622 = vand.u32 %v1475, 4294901760
  %1623 = vmatmul.f32.gmra.mxu0 %v1622
  %v1624 = vpop.f32.mrf.mxu0
  %v1625 = vadd.f32 %v1540, %v1624
  %v1626 = vand.u32 %v1478, 4294901760
  %1627 = vmatmul.f32.gmra.mxu0 %v1626
  %v1628 = vpop.f32.mrf.mxu0
  %v1629 = vadd.f32 %v1548, %v1628
  %v1630 = vand.u32 %v1481, 4294901760
  %1631 = vmatmul.f32.gmra.mxu0 %v1630
  %v1632 = vpop.f32.mrf.mxu0
  %v1633 = vadd.f32 %v1556, %v1632
  %v1634 = vand.u32 %v1484, 4294901760
  %1635 = vmatmul.f32.gmra.mxu0 %v1634
  %v1636 = vpop.f32.mrf.mxu0
  %v1637 = vadd.f32 %v1564, %v1636
  %v1638 = vand.u32 %v1487, 4294901760
  %1639 = vmatmul.f32.gmra.mxu0 %v1638
  %v1640 = vpop.f32.mrf.mxu0
  %v1641 = vadd.f32 %v1572, %v1640
  %1642 = vdwg.mxu0
  %1643 = vmatpush.msra.mxu0 0.0
  %1644 = vmatpush.msra.mxu0 0.0
  %1645 = vmatpush.msra.mxu0 0.0
  %1646 = vmatpush.msra.mxu0 0.0
  %1647 = vmatpush.msra.mxu0 0.0
  %1648 = vmatpush.msra.mxu0 0.0
  %1649 = vmatpush.msra.mxu0 0.0
  %1650 = vmatpush.msra.mxu0 0.0
  %1651 = vmatpush.msra.mxu0 0.0
  %1652 = vmatpush.msra.mxu0 0.0
  %1653 = vmatpush.msra.mxu0 0.0
  %1654 = vmatpush.msra.mxu0 0.0
  %v1655 = vand.u32 %v1408, 4294901760
  %v1656 = vsub.f32 %v1408, %v1655
  %1657 = vmatpush.msra.mxu0 %v1656
  %v1658 = vand.u32 %v1407, 4294901760
  %v1659 = vsub.f32 %v1407, %v1658
  %1660 = vmatpush.msra.mxu0 %v1659
  %v1661 = vand.u32 %v1406, 4294901760
  %v1662 = vsub.f32 %v1406, %v1661
  %1663 = vmatpush.msra.mxu0 %v1662
  %v1664 = vand.u32 %v1405, 4294901760
  %v1665 = vsub.f32 %v1405, %v1664
  %1666 = vmatpush.msra.mxu0 %v1665
  %v1667 = vand.u32 %v1466, 4294901760
  %v1668 = vsub.f32 %v1466, %v1667
  %1669 = vmatmul.f32.gmra.mxu0 %v1668
  %v1670 = vpop.f32.mrf.mxu0
  %v1671 = vadd.f32 %v1613, %v1670
  %v1672 = vand.u32 %v1469, 4294901760
  %v1673 = vsub.f32 %v1469, %v1672
  %1674 = vmatmul.f32.gmra.mxu0 %v1673
  %v1675 = vpop.f32.mrf.mxu0
  %v1676 = vadd.f32 %v1617, %v1675
  %v1677 = vand.u32 %v1472, 4294901760
  %v1678 = vsub.f32 %v1472, %v1677
  %1679 = vmatmul.f32.gmra.mxu0 %v1678
  %v1680 = vpop.f32.mrf.mxu0
  %v1681 = vadd.f32 %v1621, %v1680
  %v1682 = vand.u32 %v1475, 4294901760
  %v1683 = vsub.f32 %v1475, %v1682
  %1684 = vmatmul.f32.gmra.mxu0 %v1683
  %v1685 = vpop.f32.mrf.mxu0
  %v1686 = vadd.f32 %v1625, %v1685
  %v1687 = vand.u32 %v1478, 4294901760
  %v1688 = vsub.f32 %v1478, %v1687
  %1689 = vmatmul.f32.gmra.mxu0 %v1688
  %v1690 = vpop.f32.mrf.mxu0
  %v1691 = vadd.f32 %v1629, %v1690
  %v1692 = vand.u32 %v1481, 4294901760
  %v1693 = vsub.f32 %v1481, %v1692
  %1694 = vmatmul.f32.gmra.mxu0 %v1693
  %v1695 = vpop.f32.mrf.mxu0
  %v1696 = vadd.f32 %v1633, %v1695
  %v1697 = vand.u32 %v1484, 4294901760
  %v1698 = vsub.f32 %v1484, %v1697
  %1699 = vmatmul.f32.gmra.mxu0 %v1698
  %v1700 = vpop.f32.mrf.mxu0
  %v1701 = vadd.f32 %v1637, %v1700
  %v1702 = vand.u32 %v1487, 4294901760
  %v1703 = vsub.f32 %v1487, %v1702
  %1704 = vmatmul.f32.gmra.mxu0 %v1703
  %v1705 = vpop.f32.mrf.mxu0
  %v1706 = vadd.f32 %v1641, %v1705
  %1707 = vdwg.mxu0
  %1708 = vmatpush.msra.mxu0 0.0
  %1709 = vmatpush.msra.mxu0 0.0
  %1710 = vmatpush.msra.mxu0 0.0
  %1711 = vmatpush.msra.mxu0 0.0
  %1712 = vmatpush.msra.mxu0 0.0
  %1713 = vmatpush.msra.mxu0 0.0
  %1714 = vmatpush.msra.mxu0 0.0
  %1715 = vmatpush.msra.mxu0 0.0
  %1716 = vmatpush.msra.mxu0 0.0
  %1717 = vmatpush.msra.mxu0 0.0
  %1718 = vmatpush.msra.mxu0 0.0
  %1719 = vmatpush.msra.mxu0 0.0
  %v1720 = vand.u32 %v1408, 4294901760
  %1721 = vmatpush.msra.mxu0 %v1720
  %v1722 = vand.u32 %v1407, 4294901760
  %1723 = vmatpush.msra.mxu0 %v1722
  %v1724 = vand.u32 %v1406, 4294901760
  %1725 = vmatpush.msra.mxu0 %v1724
  %v1726 = vand.u32 %v1405, 4294901760
  %1727 = vmatpush.msra.mxu0 %v1726
  %v1728 = vand.u32 %v1466, 4294901760
  %v1729 = vsub.f32 %v1466, %v1728
  %v1730 = vand.u32 %v1729, 4294901760
  %1731 = vmatmul.f32.gmra.mxu0 %v1730
  %v1732 = vpop.f32.mrf.mxu0
  %v1733 = vadd.f32 %v1671, %v1732
  %v1734 = vand.u32 %v1469, 4294901760
  %v1735 = vsub.f32 %v1469, %v1734
  %v1736 = vand.u32 %v1735, 4294901760
  %1737 = vmatmul.f32.gmra.mxu0 %v1736
  %v1738 = vpop.f32.mrf.mxu0
  %v1739 = vadd.f32 %v1676, %v1738
  %v1740 = vand.u32 %v1472, 4294901760
  %v1741 = vsub.f32 %v1472, %v1740
  %v1742 = vand.u32 %v1741, 4294901760
  %1743 = vmatmul.f32.gmra.mxu0 %v1742
  %v1744 = vpop.f32.mrf.mxu0
  %v1745 = vadd.f32 %v1681, %v1744
  %v1746 = vand.u32 %v1475, 4294901760
  %v1747 = vsub.f32 %v1475, %v1746
  %v1748 = vand.u32 %v1747, 4294901760
  %1749 = vmatmul.f32.gmra.mxu0 %v1748
  %v1750 = vpop.f32.mrf.mxu0
  %v1751 = vadd.f32 %v1686, %v1750
  %v1752 = vand.u32 %v1478, 4294901760
  %v1753 = vsub.f32 %v1478, %v1752
  %v1754 = vand.u32 %v1753, 4294901760
  %1755 = vmatmul.f32.gmra.mxu0 %v1754
  %v1756 = vpop.f32.mrf.mxu0
  %v1757 = vadd.f32 %v1691, %v1756
  %v1758 = vand.u32 %v1481, 4294901760
  %v1759 = vsub.f32 %v1481, %v1758
  %v1760 = vand.u32 %v1759, 4294901760
  %1761 = vmatmul.f32.gmra.mxu0 %v1760
  %v1762 = vpop.f32.mrf.mxu0
  %v1763 = vadd.f32 %v1696, %v1762
  %v1764 = vand.u32 %v1484, 4294901760
  %v1765 = vsub.f32 %v1484, %v1764
  %v1766 = vand.u32 %v1765, 4294901760
  %1767 = vmatmul.f32.gmra.mxu0 %v1766
  %v1768 = vpop.f32.mrf.mxu0
  %v1769 = vadd.f32 %v1701, %v1768
  %v1770 = vand.u32 %v1487, 4294901760
  %v1771 = vsub.f32 %v1487, %v1770
  %v1772 = vand.u32 %v1771, 4294901760
  %1773 = vmatmul.f32.gmra.mxu0 %v1772
  %v1774 = vpop.f32.mrf.mxu0
  %v1775 = vadd.f32 %v1706, %v1774
  %1776 = vdwg.mxu0
  %1777 = vmatpush.msra.mxu0 0.0
  %1778 = vmatpush.msra.mxu0 0.0
  %1779 = vmatpush.msra.mxu0 0.0
  %1780 = vmatpush.msra.mxu0 0.0
  %1781 = vmatpush.msra.mxu0 0.0
  %1782 = vmatpush.msra.mxu0 0.0
  %1783 = vmatpush.msra.mxu0 0.0
  %1784 = vmatpush.msra.mxu0 0.0
  %1785 = vmatpush.msra.mxu0 0.0
  %1786 = vmatpush.msra.mxu0 0.0
  %1787 = vmatpush.msra.mxu0 0.0
  %1788 = vmatpush.msra.mxu0 0.0
  %v1789 = vand.u32 %v1408, 4294901760
  %v1790 = vsub.f32 %v1408, %v1789
  %v1791 = vand.u32 %v1790, 4294901760
  %1792 = vmatpush.msra.mxu0 %v1791
  %v1793 = vand.u32 %v1407, 4294901760
  %v1794 = vsub.f32 %v1407, %v1793
  %v1795 = vand.u32 %v1794, 4294901760
  %1796 = vmatpush.msra.mxu0 %v1795
  %v1797 = vand.u32 %v1406, 4294901760
  %v1798 = vsub.f32 %v1406, %v1797
  %v1799 = vand.u32 %v1798, 4294901760
  %1800 = vmatpush.msra.mxu0 %v1799
  %v1801 = vand.u32 %v1405, 4294901760
  %v1802 = vsub.f32 %v1405, %v1801
  %v1803 = vand.u32 %v1802, 4294901760
  %1804 = vmatpush.msra.mxu0 %v1803
  %v1805 = vand.u32 %v1466, 4294901760
  %1806 = vmatmul.f32.gmra.mxu0 %v1805
  %v1807 = vpop.f32.mrf.mxu0
  %v1808 = vadd.f32 %v1733, %v1807
  %v1809 = vand.u32 %v1469, 4294901760
  %1810 = vmatmul.f32.gmra.mxu0 %v1809
  %v1811 = vpop.f32.mrf.mxu0
  %v1812 = vadd.f32 %v1739, %v1811
  %v1813 = vand.u32 %v1472, 4294901760
  %1814 = vmatmul.f32.gmra.mxu0 %v1813
  %v1815 = vpop.f32.mrf.mxu0
  %v1816 = vadd.f32 %v1745, %v1815
  %v1817 = vand.u32 %v1475, 4294901760
  %1818 = vmatmul.f32.gmra.mxu0 %v1817
  %v1819 = vpop.f32.mrf.mxu0
  %v1820 = vadd.f32 %v1751, %v1819
  %v1821 = vand.u32 %v1478, 4294901760
  %1822 = vmatmul.f32.gmra.mxu0 %v1821
  %v1823 = vpop.f32.mrf.mxu0
  %v1824 = vadd.f32 %v1757, %v1823
  %v1825 = vand.u32 %v1481, 4294901760
  %1826 = vmatmul.f32.gmra.mxu0 %v1825
  %v1827 = vpop.f32.mrf.mxu0
  %v1828 = vadd.f32 %v1763, %v1827
  %v1829 = vand.u32 %v1484, 4294901760
  %1830 = vmatmul.f32.gmra.mxu0 %v1829
  %v1831 = vpop.f32.mrf.mxu0
  %v1832 = vadd.f32 %v1769, %v1831
  %v1833 = vand.u32 %v1487, 4294901760
  %1834 = vmatmul.f32.gmra.mxu0 %v1833
  %v1835 = vpop.f32.mrf.mxu0
  %v1836 = vadd.f32 %v1775, %v1835
  %1837 = vdwg.mxu0
  %1838 = vmatpush.msra.mxu0 0.0
  %1839 = vmatpush.msra.mxu0 0.0
  %1840 = vmatpush.msra.mxu0 0.0
  %1841 = vmatpush.msra.mxu0 0.0
  %1842 = vmatpush.msra.mxu0 0.0
  %1843 = vmatpush.msra.mxu0 0.0
  %1844 = vmatpush.msra.mxu0 0.0
  %1845 = vmatpush.msra.mxu0 0.0
  %1846 = vmatpush.msra.mxu0 0.0
  %1847 = vmatpush.msra.mxu0 0.0
  %1848 = vmatpush.msra.mxu0 0.0
  %1849 = vmatpush.msra.mxu0 0.0
  %v1850 = vand.u32 %v1408, 4294901760
  %1851 = vmatpush.msra.mxu0 %v1850
  %v1852 = vand.u32 %v1407, 4294901760
  %1853 = vmatpush.msra.mxu0 %v1852
  %v1854 = vand.u32 %v1406, 4294901760
  %1855 = vmatpush.msra.mxu0 %v1854
  %v1856 = vand.u32 %v1405, 4294901760
  %1857 = vmatpush.msra.mxu0 %v1856
  %v1858 = vand.u32 %v1466, 4294901760
  %1859 = vmatmul.f32.gmra.mxu0 %v1858
  %v1860 = vpop.f32.mrf.mxu0
  %v1861 = vadd.f32 %v1808, %v1860
  %v1862 = vand.u32 %v1469, 4294901760
  %1863 = vmatmul.f32.gmra.mxu0 %v1862
  %v1864 = vpop.f32.mrf.mxu0
  %v1865 = vadd.f32 %v1812, %v1864
  %v1866 = vand.u32 %v1472, 4294901760
  %1867 = vmatmul.f32.gmra.mxu0 %v1866
  %v1868 = vpop.f32.mrf.mxu0
  %v1869 = vadd.f32 %v1816, %v1868
  %v1870 = vand.u32 %v1475, 4294901760
  %1871 = vmatmul.f32.gmra.mxu0 %v1870
  %v1872 = vpop.f32.mrf.mxu0
  %v1873 = vadd.f32 %v1820, %v1872
  %v1874 = vand.u32 %v1478, 4294901760
  %1875 = vmatmul.f32.gmra.mxu0 %v1874
  %v1876 = vpop.f32.mrf.mxu0
  %v1877 = vadd.f32 %v1824, %v1876
  %v1878 = vand.u32 %v1481, 4294901760
  %1879 = vmatmul.f32.gmra.mxu0 %v1878
  %v1880 = vpop.f32.mrf.mxu0
  %v1881 = vadd.f32 %v1828, %v1880
  %v1882 = vand.u32 %v1484, 4294901760
  %1883 = vmatmul.f32.gmra.mxu0 %v1882
  %v1884 = vpop.f32.mrf.mxu0
  %v1885 = vadd.f32 %v1832, %v1884
  %v1886 = vand.u32 %v1487, 4294901760
  %1887 = vmatmul.f32.gmra.mxu0 %v1886
  %v1888 = vpop.f32.mrf.mxu0
  %v1889 = vadd.f32 %v1836, %v1888
  %1890 = vdwg.mxu0
  %v1891 = vmax.f32 %v1861, 0.0
  %v1892 = vmax.f32 %v1865, 0.0
  %v1893 = vmax.f32 %v1869, 0.0
  %v1894 = vmax.f32 %v1873, 0.0
  %v1895 = vmax.f32 %v1877, 0.0
  %v1896 = vmax.f32 %v1881, 0.0
  %v1897 = vmax.f32 %v1885, 0.0
  %v1898 = vmax.f32 %v1889, 0.0
  %v1899 = vld [vmem:[%s11] sm:$0x1f]
  %v1900 = vld [vmem:[%s12] sm:$0x1f]
  %1902 = vset.pattern.permute.xlu0 0
  %1903 = vperm.xlu0 %1902, %v1900
  %v1904 = vpop.permute.xlu0 %1903
  %v1907 = vsel %vm528, %v1899, 0
  %1909 = vmatpush.msra.mxu0 0.0
  %1910 = vmatpush.msra.mxu0 0.0
  %1911 = vmatpush.msra.mxu0 0.0
  %1912 = vmatpush.msra.mxu0 0.0
  %1913 = vmatpush.msra.mxu0 0.0
  %1914 = vmatpush.msra.mxu0 0.0
  %1915 = vmatpush.msra.mxu0 0.0
  %1916 = vmatpush.msra.mxu0 0.0
  %v1917 = vand.u32 %v1898, 4294901760
  %1918 = vmatpush.msra.mxu0 %v1917
  %v1919 = vand.u32 %v1897, 4294901760
  %1920 = vmatpush.msra.mxu0 %v1919
  %v1921 = vand.u32 %v1896, 4294901760
  %1922 = vmatpush.msra.mxu0 %v1921
  %v1923 = vand.u32 %v1895, 4294901760
  %1924 = vmatpush.msra.mxu0 %v1923
  %v1925 = vand.u32 %v1894, 4294901760
  %1926 = vmatpush.msra.mxu0 %v1925
  %v1927 = vand.u32 %v1893, 4294901760
  %1928 = vmatpush.msra.mxu0 %v1927
  %v1929 = vand.u32 %v1892, 4294901760
  %1930 = vmatpush.msra.mxu0 %v1929
  %v1931 = vand.u32 %v1891, 4294901760
  %1932 = vmatpush.msra.mxu0 %v1931
  %v1933 = vand.u32 %v1907, 4294901760
  %v1934 = vsub.f32 %v1907, %v1933
  %v1935 = vand.u32 %v1934, 4294901760
  %v1936 = vsub.f32 %v1934, %v1935
  %v1937 = vand.u32 %v1936, 4294901760
  %1938 = vmatmul.f32.gmra.mxu0 %v1937
  %v1939 = vpop.f32.mrf.mxu0
  %v1940 = vadd.f32 %v1904, %v1939
  %1941 = vdwg.mxu0
  %1942 = vmatpush.msra.mxu0 0.0
  %1943 = vmatpush.msra.mxu0 0.0
  %1944 = vmatpush.msra.mxu0 0.0
  %1945 = vmatpush.msra.mxu0 0.0
  %1946 = vmatpush.msra.mxu0 0.0
  %1947 = vmatpush.msra.mxu0 0.0
  %1948 = vmatpush.msra.mxu0 0.0
  %1949 = vmatpush.msra.mxu0 0.0
  %v1950 = vand.u32 %v1898, 4294901760
  %v1951 = vsub.f32 %v1898, %v1950
  %v1952 = vand.u32 %v1951, 4294901760
  %v1953 = vsub.f32 %v1951, %v1952
  %v1954 = vand.u32 %v1953, 4294901760
  %1955 = vmatpush.msra.mxu0 %v1954
  %v1956 = vand.u32 %v1897, 4294901760
  %v1957 = vsub.f32 %v1897, %v1956
  %v1958 = vand.u32 %v1957, 4294901760
  %v1959 = vsub.f32 %v1957, %v1958
  %v1960 = vand.u32 %v1959, 4294901760
  %1961 = vmatpush.msra.mxu0 %v1960
  %v1962 = vand.u32 %v1896, 4294901760
  %v1963 = vsub.f32 %v1896, %v1962
  %v1964 = vand.u32 %v1963, 4294901760
  %v1965 = vsub.f32 %v1963, %v1964
  %v1966 = vand.u32 %v1965, 4294901760
  %1967 = vmatpush.msra.mxu0 %v1966
  %v1968 = vand.u32 %v1895, 4294901760
  %v1969 = vsub.f32 %v1895, %v1968
  %v1970 = vand.u32 %v1969, 4294901760
  %v1971 = vsub.f32 %v1969, %v1970
  %v1972 = vand.u32 %v1971, 4294901760
  %1973 = vmatpush.msra.mxu0 %v1972
  %v1974 = vand.u32 %v1894, 4294901760
  %v1975 = vsub.f32 %v1894, %v1974
  %v1976 = vand.u32 %v1975, 4294901760
  %v1977 = vsub.f32 %v1975, %v1976
  %v1978 = vand.u32 %v1977, 4294901760
  %1979 = vmatpush.msra.mxu0 %v1978
  %v1980 = vand.u32 %v1893, 4294901760
  %v1981 = vsub.f32 %v1893, %v1980
  %v1982 = vand.u32 %v1981, 4294901760
  %v1983 = vsub.f32 %v1981, %v1982
  %v1984 = vand.u32 %v1983, 4294901760
  %1985 = vmatpush.msra.mxu0 %v1984
  %v1986 = vand.u32 %v1892, 4294901760
  %v1987 = vsub.f32 %v1892, %v1986
  %v1988 = vand.u32 %v1987, 4294901760
  %v1989 = vsub.f32 %v1987, %v1988
  %v1990 = vand.u32 %v1989, 4294901760
  %1991 = vmatpush.msra.mxu0 %v1990
  %v1992 = vand.u32 %v1891, 4294901760
  %v1993 = vsub.f32 %v1891, %v1992
  %v1994 = vand.u32 %v1993, 4294901760
  %v1995 = vsub.f32 %v1993, %v1994
  %v1996 = vand.u32 %v1995, 4294901760
  %1997 = vmatpush.msra.mxu0 %v1996
  %v1998 = vand.u32 %v1907, 4294901760
  %1999 = vmatmul.f32.gmra.mxu0 %v1998
  %v2000 = vpop.f32.mrf.mxu0
  %v2001 = vadd.f32 %v1940, %v2000
  %2002 = vdwg.mxu0
  %2003 = vmatpush.msra.mxu0 0.0
  %2004 = vmatpush.msra.mxu0 0.0
  %2005 = vmatpush.msra.mxu0 0.0
  %2006 = vmatpush.msra.mxu0 0.0
  %2007 = vmatpush.msra.mxu0 0.0
  %2008 = vmatpush.msra.mxu0 0.0
  %2009 = vmatpush.msra.mxu0 0.0
  %2010 = vmatpush.msra.mxu0 0.0
  %v2011 = vand.u32 %v1898, 4294901760
  %v2012 = vsub.f32 %v1898, %v2011
  %2013 = vmatpush.msra.mxu0 %v2012
  %v2014 = vand.u32 %v1897, 4294901760
  %v2015 = vsub.f32 %v1897, %v2014
  %2016 = vmatpush.msra.mxu0 %v2015
  %v2017 = vand.u32 %v1896, 4294901760
  %v2018 = vsub.f32 %v1896, %v2017
  %2019 = vmatpush.msra.mxu0 %v2018
  %v2020 = vand.u32 %v1895, 4294901760
  %v2021 = vsub.f32 %v1895, %v2020
  %2022 = vmatpush.msra.mxu0 %v2021
  %v2023 = vand.u32 %v1894, 4294901760
  %v2024 = vsub.f32 %v1894, %v2023
  %2025 = vmatpush.msra.mxu0 %v2024
  %v2026 = vand.u32 %v1893, 4294901760
  %v2027 = vsub.f32 %v1893, %v2026
  %2028 = vmatpush.msra.mxu0 %v2027
  %v2029 = vand.u32 %v1892, 4294901760
  %v2030 = vsub.f32 %v1892, %v2029
  %2031 = vmatpush.msra.mxu0 %v2030
  %v2032 = vand.u32 %v1891, 4294901760
  %v2033 = vsub.f32 %v1891, %v2032
  %2034 = vmatpush.msra.mxu0 %v2033
  %v2035 = vand.u32 %v1907, 4294901760
  %v2036 = vsub.f32 %v1907, %v2035
  %2037 = vmatmul.f32.gmra.mxu0 %v2036
  %v2038 = vpop.f32.mrf.mxu0
  %v2039 = vadd.f32 %v2001, %v2038
  %2040 = vdwg.mxu0
  %2041 = vmatpush.msra.mxu0 0.0
  %2042 = vmatpush.msra.mxu0 0.0
  %2043 = vmatpush.msra.mxu0 0.0
  %2044 = vmatpush.msra.mxu0 0.0
  %2045 = vmatpush.msra.mxu0 0.0
  %2046 = vmatpush.msra.mxu0 0.0
  %2047 = vmatpush.msra.mxu0 0.0
  %2048 = vmatpush.msra.mxu0 0.0
  %v2049 = vand.u32 %v1898, 4294901760
  %2050 = vmatpush.msra.mxu0 %v2049
  %v2051 = vand.u32 %v1897, 4294901760
  %2052 = vmatpush.msra.mxu0 %v2051
  %v2053 = vand.u32 %v1896, 4294901760
  %2054 = vmatpush.msra.mxu0 %v2053
  %v2055 = vand.u32 %v1895, 4294901760
  %2056 = vmatpush.msra.mxu0 %v2055
  %v2057 = vand.u32 %v1894, 4294901760
  %2058 = vmatpush.msra.mxu0 %v2057
  %v2059 = vand.u32 %v1893, 4294901760
  %2060 = vmatpush.msra.mxu0 %v2059
  %v2061 = vand.u32 %v1892, 4294901760
  %2062 = vmatpush.msra.mxu0 %v2061
  %v2063 = vand.u32 %v1891, 4294901760
  %2064 = vmatpush.msra.mxu0 %v2063
  %v2065 = vand.u32 %v1907, 4294901760
  %v2066 = vsub.f32 %v1907, %v2065
  %v2067 = vand.u32 %v2066, 4294901760
  %2068 = vmatmul.f32.gmra.mxu0 %v2067
  %v2069 = vpop.f32.mrf.mxu0
  %v2070 = vadd.f32 %v2039, %v2069
  %2071 = vdwg.mxu0
  %2072 = vmatpush.msra.mxu0 0.0
  %2073 = vmatpush.msra.mxu0 0.0
  %2074 = vmatpush.msra.mxu0 0.0
  %2075 = vmatpush.msra.mxu0 0.0
  %2076 = vmatpush.msra.mxu0 0.0
  %2077 = vmatpush.msra.mxu0 0.0
  %2078 = vmatpush.msra.mxu0 0.0
  %2079 = vmatpush.msra.mxu0 0.0
  %v2080 = vand.u32 %v1898, 4294901760
  %v2081 = vsub.f32 %v1898, %v2080
  %v2082 = vand.u32 %v2081, 4294901760
  %2083 = vmatpush.msra.mxu0 %v2082
  %v2084 = vand.u32 %v1897, 4294901760
  %v2085 = vsub.f32 %v1897, %v2084
  %v2086 = vand.u32 %v2085, 4294901760
  %2087 = vmatpush.msra.mxu0 %v2086
  %v2088 = vand.u32 %v1896, 4294901760
  %v2089 = vsub.f32 %v1896, %v2088
  %v2090 = vand.u32 %v2089, 4294901760
  %2091 = vmatpush.msra.mxu0 %v2090
  %v2092 = vand.u32 %v1895, 4294901760
  %v2093 = vsub.f32 %v1895, %v2092
  %v2094 = vand.u32 %v2093, 4294901760
  %2095 = vmatpush.msra.mxu0 %v2094
  %v2096 = vand.u32 %v1894, 4294901760
  %v2097 = vsub.f32 %v1894, %v2096
  %v2098 = vand.u32 %v2097, 4294901760
  %2099 = vmatpush.msra.mxu0 %v2098
  %v2100 = vand.u32 %v1893, 4294901760
  %v2101 = vsub.f32 %v1893, %v2100
  %v2102 = vand.u32 %v2101, 4294901760
  %2103 = vmatpush.msra.mxu0 %v2102
  %v2104 = vand.u32 %v1892, 4294901760
  %v2105 = vsub.f32 %v1892, %v2104
  %v2106 = vand.u32 %v2105, 4294901760
  %2107 = vmatpush.msra.mxu0 %v2106
  %v2108 = vand.u32 %v1891, 4294901760
  %v2109 = vsub.f32 %v1891, %v2108
  %v2110 = vand.u32 %v2109, 4294901760
  %2111 = vmatpush.msra.mxu0 %v2110
  %v2112 = vand.u32 %v1907, 4294901760
  %2113 = vmatmul.f32.gmra.mxu0 %v2112
  %v2114 = vpop.f32.mrf.mxu0
  %v2115 = vadd.f32 %v2070, %v2114
  %2116 = vdwg.mxu0
  %2117 = vmatpush.msra.mxu0 0.0
  %2118 = vmatpush.msra.mxu0 0.0
  %2119 = vmatpush.msra.mxu0 0.0
  %2120 = vmatpush.msra.mxu0 0.0
  %2121 = vmatpush.msra.mxu0 0.0
  %2122 = vmatpush.msra.mxu0 0.0
  %2123 = vmatpush.msra.mxu0 0.0
  %2124 = vmatpush.msra.mxu0 0.0
  %v2125 = vand.u32 %v1898, 4294901760
  %2126 = vmatpush.msra.mxu0 %v2125
  %v2127 = vand.u32 %v1897, 4294901760
  %2128 = vmatpush.msra.mxu0 %v2127
  %v2129 = vand.u32 %v1896, 4294901760
  %2130 = vmatpush.msra.mxu0 %v2129
  %v2131 = vand.u32 %v1895, 4294901760
  %2132 = vmatpush.msra.mxu0 %v2131
  %v2133 = vand.u32 %v1894, 4294901760
  %2134 = vmatpush.msra.mxu0 %v2133
  %v2135 = vand.u32 %v1893, 4294901760
  %2136 = vmatpush.msra.mxu0 %v2135
  %v2137 = vand.u32 %v1892, 4294901760
  %2138 = vmatpush.msra.mxu0 %v2137
  %v2139 = vand.u32 %v1891, 4294901760
  %2140 = vmatpush.msra.mxu0 %v2139
  %v2141 = vand.u32 %v1907, 4294901760
  %2142 = vmatmul.f32.gmra.mxu0 %v2141
  %v2143 = vpop.f32.mrf.mxu0
  %v2144 = vadd.f32 %v2115, %v2143
  %2145 = vdwg.mxu0
  %vm2146 = vcmask 64512
  %2147 = vst.msk [vmem:[%s13] sm:$0xff] %vm2146, %v1106
  %2148 = vst.msk [vmem:[%s13 + $0x8] sm:$0xff] %vm2146, %v1110
  %vm2149 = vcmask 61440
  %2150 = vst.msk [vmem:[%s13 + $0x10] sm:$0x1f] %vm2149, %v2144
  // Predicated region
  $region54: #{anomaly_detector_forward.1} parent=0 // pred_check
    _
  $region55: #{anomaly_detector_forward.1} parent=0 // pred_check_branch
    %2152 = sbr.rel (0) target = $region57
  $region56: #{anomaly_detector_forward.1} parent=0 // pred_region
    _
  $region57: #{anomaly_detector_forward.1} parent=0 // pred_fallthru
    _
  // Predicated region
  $region58: #{anomaly_detector_forward.1} parent=0 // pred_check
    _
  $region59: #{anomaly_detector_forward.1} parent=0 // pred_check_branch
    %2154 = sbr.rel (0) target = $region61
  $region60: #{anomaly_detector_forward.1} parent=0 // pred_region
    _
  $region61: #{anomaly_detector_forward.1} parent=0 // pred_fallthru
    _

</llo_original>
